<compile_context>
chip_gen: v5e
topology: v5e:2x2
jax: 0.10.0
libtpu: 0.0.40
codegen_flags: <defaults>
</compile_context>

<pallas_src>
import math

import jax
import jax.numpy as jnp
from jax.experimental import pallas as pl
from jax.experimental.pallas import tpu as pltpu


NEG_INF = -1e30

_COMPILER_PARAMS = pltpu.CompilerParams(
    dimension_semantics=("parallel",),          # batch axis is fully independent
    vmem_limit_bytes=64 * 1024 * 1024,
)


# ----------------------------------------------------------------------------
# In-kernel helpers
# ----------------------------------------------------------------------------
def _layernorm(x, w, b, eps=1e-5):
    mu = jnp.mean(x, axis=-1, keepdims=True)
    xc = x - mu
    var = jnp.mean(xc * xc, axis=-1, keepdims=True)
    return xc * jax.lax.rsqrt(var + eps) * w + b


def _full_spec(a):
    nd = a.ndim
    return pl.BlockSpec(a.shape, lambda b, _nd=nd: (0,) * _nd)


# ----------------------------------------------------------------------------
# Fused transformer layer kernel:
#   x <- x + out_proj(attn(rotary(qk_ln(qkv(ln(x)))))) / scale
#   x <- x + W2(silu(a1) * a2) / scale          with [a1, a2] = W13(ln(x))
# ----------------------------------------------------------------------------
def make_layer_kernel(n_heads, d_head, hidden, inv_residue_scale, attn_scale):
    def kernel(x_ref, sid_row_ref, sid_col_ref,
               lnw_ref, lnb_ref, wqkv_ref, qlnw_ref, klnw_ref,
               cos_ref, sin_ref, wo_ref,
               fln_w_ref, fln_b_ref, w13_ref, w2_ref,
               o_ref):
        x = x_ref[0]                                   # (S, D) float32
        S, D = x.shape
        half = d_head // 2

        # Additive attention bias built on-chip from the pad flags (no (S,S)
        # mask DMA): attention allowed where pad-status matches.
        allowed = sid_col_ref[0] == sid_row_ref[0]     # (S,1) == (1,S) -> (S,S)
        bias = jnp.where(allowed, 0.0, NEG_INF).astype(jnp.float32)

        # ---- attention sub-block ----
        h = _layernorm(x, lnw_ref[...], lnb_ref[...])
        qkv = jnp.dot(h.astype(jnp.bfloat16), wqkv_ref[...],
                      preferred_element_type=jnp.float32)      # (S, 3D) f32
        q = _layernorm(qkv[:, :D], qlnw_ref[...], 0.0)          # qk-LN, bias=False
        k = _layernorm(qkv[:, D:2 * D], klnw_ref[...], 0.0)
        v = qkv[:, 2 * D:]

        cos = cos_ref[...]                                      # (S, d_head)
        sin = sin_ref[...]

        def heads(t):                                           # (S, D) -> (H, S, d_head)
            return t.reshape(S, n_heads, d_head).transpose(1, 0, 2)

        def rope(t):                                            # rotate-half rotary
            tr = jnp.concatenate([-t[..., half:], t[..., :half]], axis=-1)
            return t * cos + tr * sin

        qh = rope(heads(q)) * attn_scale                        # fold 1/sqrt(d_head) into q
        kh = rope(heads(k))
        vh = heads(v)

        scores = jnp.einsum("hqd,hkd->hqk",
                            qh.astype(jnp.bfloat16), kh.astype(jnp.bfloat16),
                            preferred_element_type=jnp.float32)  # (H, S, S) f32
        scores = scores + bias                                   # broadcast over heads
        m = jnp.max(scores, axis=-1, keepdims=True)
        p = jnp.exp(scores - m)
        p = p * pl.reciprocal(jnp.sum(p, axis=-1, keepdims=True), approx=True)
        ctx = jnp.einsum("hqk,hkd->hqd",
                         p.astype(jnp.bfloat16), vh.astype(jnp.bfloat16),
                         preferred_element_type=jnp.float32)     # (H, S, d_head)
        ctx = ctx.transpose(1, 0, 2).reshape(S, D)
        attn_out = jnp.dot(ctx.astype(jnp.bfloat16), wo_ref[...],
                           preferred_element_type=jnp.float32)
        x = x + attn_out * inv_residue_scale

        # ---- SwiGLU FFN sub-block ----
        h2 = _layernorm(x, fln_w_ref[...], fln_b_ref[...])
        a = jnp.dot(h2.astype(jnp.bfloat16), w13_ref[...],
                    preferred_element_type=jnp.float32)          # (S, 2*hidden)
        x1 = a[:, :hidden]
        x2 = a[:, hidden:]
        g = x1 * jax.nn.sigmoid(x1) * x2
        ffn_out = jnp.dot(g.astype(jnp.bfloat16), w2_ref[...],
                          preferred_element_type=jnp.float32)
        o_ref[0] = x + ffn_out * inv_residue_scale

    return kernel


def transformer_layer(x, sid_row, sid_col, layer_bf, cos, sin,
                      n_heads, d_head, hidden, inv_residue_scale, attn_scale):
    B, S, D = x.shape
    kernel = make_layer_kernel(n_heads, d_head, hidden, inv_residue_scale, attn_scale)
    # TODO(synk): at production ESMC sizes (d_model>=1152) the wqkv/w13/w2 matmuls
    # should be N/K-tiled (e.g. pltpu.emit_pipeline) instead of kept fully resident
    # in VMEM, to fit v7x's 64 MiB VMEM; at these sizes resident weights are fine.
    args = (x, sid_row, sid_col,
            layer_bf["ln_qkv_w"], layer_bf["ln_qkv_b"], layer_bf["wqkv"],
            layer_bf["q_ln_w"], layer_bf["k_ln_w"], cos, sin, layer_bf["wo"],
            layer_bf["ffn_ln_w"], layer_bf["ffn_ln_b"], layer_bf["w13"], layer_bf["w2"])
    in_specs = [pl.BlockSpec((1, S, D), lambda b: (b, 0, 0)),
                pl.BlockSpec((1, 1, S), lambda b: (b, 0, 0)),
                pl.BlockSpec((1, S, 1), lambda b: (b, 0, 0))]
    in_specs += [_full_spec(a) for a in args[3:]]
    return pl.pallas_call(
        kernel,
        out_shape=jax.ShapeDtypeStruct((B, S, D), jnp.float32),
        grid=(B,),
        in_specs=in_specs,
        out_specs=pl.BlockSpec((1, S, D), lambda b: (b, 0, 0)),
        compiler_params=_COMPILER_PARAMS,
    )(*args)


# ----------------------------------------------------------------------------
# Final stack LayerNorm (bias=False) fused with RegressionHead:
#   embeddings = LN(x);  logits = Linear(LN(GELU(Linear(embeddings))))
# Logits are emitted lane-dense (padded to a multiple of 128) and sliced outside.
# ----------------------------------------------------------------------------
def head_kernel(x_ref, fln_ref, w1_ref, b1_ref, lnw_ref, lnb_ref, w2_ref, b2_ref,
                emb_ref, logit_ref):
    x = x_ref[0]
    emb = _layernorm(x, fln_ref[...], 0.0)
    emb_ref[0] = emb
    h = jnp.dot(emb.astype(jnp.bfloat16), w1_ref[...],
                preferred_element_type=jnp.float32) + b1_ref[...]
    h = jax.nn.gelu(h, approximate=False)
    h = _layernorm(h, lnw_ref[...], lnb_ref[...])
    logit_ref[0] = jnp.dot(h.astype(jnp.bfloat16), w2_ref[...],
                           preferred_element_type=jnp.float32) + b2_ref[...]


def final_norm_and_head(x, final_ln_w, head):
    B, S, D = x.shape
    vocab = head["w2"].shape[1]
    padded = ((vocab + 127) // 128) * 128          # lane-dense store width
    w2p = jnp.pad(head["w2"], ((0, 0), (0, padded - vocab))).astype(jnp.bfloat16)
    b2p = jnp.pad(head["b2"], ((0, 0), (0, padded - vocab)))
    args = (x, final_ln_w, head["w1"].astype(jnp.bfloat16), head["b1"],
            head["ln_w"], head["ln_b"], w2p, b2p)
    in_specs = [pl.BlockSpec((1, S, D), lambda b: (b, 0, 0))]
    in_specs += [_full_spec(a) for a in args[1:]]
    emb, logits_p = pl.pallas_call(
        head_kernel,
        out_shape=(jax.ShapeDtypeStruct((B, S, D), jnp.float32),
                   jax.ShapeDtypeStruct((B, S, padded), jnp.float32)),
        grid=(B,),
        in_specs=in_specs,
        out_specs=(pl.BlockSpec((1, S, D), lambda b: (b, 0, 0)),
                   pl.BlockSpec((1, S, padded), lambda b: (b, 0, 0))),
        compiler_params=_COMPILER_PARAMS,
    )(*args)
    return emb, logits_p[..., :vocab]


# ----------------------------------------------------------------------------
# Full ESMC forward
# ----------------------------------------------------------------------------
def esmc_forward(sequence_tokens, params, n_heads, n_layers, hidden, pad_token_id):
    d_model = params["embed"].shape[1]
    d_head = d_model // n_heads
    # TransformerStack scale_residue=True -> residue_scale = sqrt(n_layers / 36)
    inv_residue_scale = 1.0 / math.sqrt(n_layers / 36.0)
    attn_scale = 1.0 / math.sqrt(d_head)

    # Embedding lookup (plain-JAX glue: data-dependent gather).
    x = jnp.take(params["embed"], sequence_tokens, axis=0).astype(jnp.float32)
    B, S, _ = x.shape

    # Pad flags (sequence_id) passed as tiny row/col vectors; the (S,S) additive
    # mask is built inside the kernel.
    seq_pad = (sequence_tokens == pad_token_id).astype(jnp.float32)   # (B, S)
    sid_row = seq_pad[:, None, :]                                     # (B, 1, S)
    sid_col = seq_pad[:, :, None]                                     # (B, S, 1)

    # Rotary tables (non-interleaved rotate-half), tiled to full d_head.
    inv_freq = 1.0 / (10000.0 ** (jnp.arange(0, d_head, 2, dtype=jnp.float32) / d_head))
    t = jnp.arange(S, dtype=jnp.float32)
    freqs = jnp.outer(t, inv_freq)                                    # (S, d_head/2)
    cos = jnp.concatenate([jnp.cos(freqs), jnp.cos(freqs)], axis=-1)
    sin = jnp.concatenate([jnp.sin(freqs), jnp.sin(freqs)], axis=-1)

    hiddens = []
    for layer in params["layers"]:
        layer_bf = dict(layer)
        for name in ("wqkv", "wo", "w13", "w2"):     # bf16 MXU operands, f32 accum
            layer_bf[name] = layer[name].astype(jnp.bfloat16)
        x = transformer_layer(x, sid_row, sid_col, layer_bf, cos, sin,
                              n_heads, d_head, hidden, inv_residue_scale, attn_scale)
        hiddens.append(x)
    hiddens = jnp.stack(hiddens, axis=0)                              # (n_layers, B, S, D)

    embeddings, sequence_logits = final_norm_and_head(
        x, params["final_ln_w"], params["head"])

    # TODO(synk): attentions are not materialized by the reference TransformerStack
    # fast path reproduced here; returned as None.
    return sequence_logits, embeddings, hiddens, None


# ----------------------------------------------------------------------------
# Deterministic parameter init (shapes from ESMC.__init__)
# ----------------------------------------------------------------------------
def init_params(key, d_model, n_layers, vocab=64):
    hidden = int(((8 / 3 * d_model) + 255) // 256 * 256)  # swiglu_correction_fn
    keys = jax.random.split(key, 2 + n_layers)

    params = {"embed": 0.02 * jax.random.normal(keys[0], (vocab, d_model), jnp.float32)}

    layers = []
    for i in range(n_layers):
        ks = jax.random.split(keys[1 + i], 4)
        layers.append({
            "ln_qkv_w": jnp.ones((1, d_model), jnp.float32),
            "ln_qkv_b": jnp.zeros((1, d_model), jnp.float32),
            "wqkv": 0.02 * jax.random.normal(ks[0], (d_model, 3 * d_model), jnp.float32),
            "q_ln_w": jnp.ones((1, d_model), jnp.float32),
            "k_ln_w": jnp.ones((1, d_model), jnp.float32),
            "wo": 0.02 * jax.random.normal(ks[1], (d_model, d_model), jnp.float32),
            "ffn_ln_w": jnp.ones((1, d_model), jnp.float32),
            "ffn_ln_b": jnp.zeros((1, d_model), jnp.float32),
            "w13": 0.02 * jax.random.normal(ks[2], (d_model, 2 * hidden), jnp.float32),
            "w2": 0.02 * jax.random.normal(ks[3], (hidden, d_model), jnp.float32),
        })
    params["layers"] = layers
    params["final_ln_w"] = jnp.ones((1, d_model), jnp.float32)

    kh = jax.random.split(keys[1 + n_layers], 2)
    params["head"] = {
        "w1": 0.02 * jax.random.normal(kh[0], (d_model, d_model), jnp.float32),
        "b1": jnp.zeros((1, d_model), jnp.float32),
        "ln_w": jnp.ones((1, d_model), jnp.float32),
        "ln_b": jnp.zeros((1, d_model), jnp.float32),
        "w2": 0.02 * jax.random.normal(kh[1], (d_model, vocab), jnp.float32),
        "b2": jnp.zeros((1, vocab), jnp.float32),
    }
    return params, hidden


if __name__ == "__main__":
    B, S = 2, 8
    d_model, n_heads, n_layers = 32, 2, 2
    vocab, pad_token_id = 64, 1

    key = jax.random.PRNGKey(0)
    k_param, k_tok = jax.random.split(key)

    params, hidden = init_params(k_param, d_model, n_layers, vocab)

    sequence_tokens = jax.random.randint(k_tok, (B, S), 0, vocab, dtype=jnp.int32)
    sequence_tokens = sequence_tokens.at[:, -2:].set(pad_token_id)  # some padding

    logits, embeddings, hiddens, _ = esmc_forward(
        sequence_tokens, params, n_heads, n_layers, hidden, pad_token_id)

    jax.block_until_ready((logits, embeddings, hiddens))
    assert logits.shape == (B, S, vocab)
    assert embeddings.shape == (B, S, d_model)
    assert hiddens.shape == (n_layers, B, S, d_model)
    print("KERNEL_OK")
</pallas_src>

<mosaic_0001>
module attributes {stable_mosaic.version = 11 : i64} {
  func.func @kernel(%arg0: i32, %arg1: memref<1x8x32xf32, #tpu.memory_space<vmem>>, %arg2: memref<1x1x8xf32, #tpu.memory_space<vmem>>, %arg3: memref<1x8x1xf32, #tpu.memory_space<vmem>>, %arg4: memref<1x32xf32, #tpu.memory_space<vmem>>, %arg5: memref<1x32xf32, #tpu.memory_space<vmem>>, %arg6: memref<32x96xbf16, #tpu.memory_space<vmem>>, %arg7: memref<1x32xf32, #tpu.memory_space<vmem>>, %arg8: memref<1x32xf32, #tpu.memory_space<vmem>>, %arg9: memref<8x16xf32, #tpu.memory_space<vmem>>, %arg10: memref<8x16xf32, #tpu.memory_space<vmem>>, %arg11: memref<32x32xbf16, #tpu.memory_space<vmem>>, %arg12: memref<1x32xf32, #tpu.memory_space<vmem>>, %arg13: memref<1x32xf32, #tpu.memory_space<vmem>>, %arg14: memref<32x512xbf16, #tpu.memory_space<vmem>>, %arg15: memref<256x32xbf16, #tpu.memory_space<vmem>>, %arg16: memref<1x8x32xf32, #tpu.memory_space<vmem>>) attributes {dimension_semantics = [#tpu.dimension_semantics<parallel>], iteration_bounds = array<i64: 2>, scalar_prefetch = 0 : i64, scratch_operands = 0 : i64, tpu.core_type = #tpu.core_type<tc>, window_params = [{transform_indices = @transform_0, window_bounds = array<i64: 1, 8, 32>}, {transform_indices = @transform_1, window_bounds = array<i64: 1, 1, 8>}, {transform_indices = @transform_2, window_bounds = array<i64: 1, 8, 1>}, {pipeline_mode = #tpu.pipeline_mode<synchronous>, transform_indices = @transform_3, window_bounds = array<i64: 1, 32>}, {pipeline_mode = #tpu.pipeline_mode<synchronous>, transform_indices = @transform_4, window_bounds = array<i64: 1, 32>}, {pipeline_mode = #tpu.pipeline_mode<synchronous>, transform_indices = @transform_5, window_bounds = array<i64: 32, 96>}, {pipeline_mode = #tpu.pipeline_mode<synchronous>, transform_indices = @transform_6, window_bounds = array<i64: 1, 32>}, {pipeline_mode = #tpu.pipeline_mode<synchronous>, transform_indices = @transform_7, window_bounds = array<i64: 1, 32>}, {pipeline_mode = #tpu.pipeline_mode<synchronous>, transform_indices = @transform_8, window_bounds = array<i64: 8, 16>}, {pipeline_mode = #tpu.pipeline_mode<synchronous>, transform_indices = @transform_9, window_bounds = array<i64: 8, 16>}, {pipeline_mode = #tpu.pipeline_mode<synchronous>, transform_indices = @transform_10, window_bounds = array<i64: 32, 32>}, {pipeline_mode = #tpu.pipeline_mode<synchronous>, transform_indices = @transform_11, window_bounds = array<i64: 1, 32>}, {pipeline_mode = #tpu.pipeline_mode<synchronous>, transform_indices = @transform_12, window_bounds = array<i64: 1, 32>}, {pipeline_mode = #tpu.pipeline_mode<synchronous>, transform_indices = @transform_13, window_bounds = array<i64: 32, 512>}, {pipeline_mode = #tpu.pipeline_mode<synchronous>, transform_indices = @transform_14, window_bounds = array<i64: 256, 32>}, {transform_indices = @transform_15, window_bounds = array<i64: 1, 8, 32>}]} {
    %c0 = arith.constant 0 : index
    %c0_0 = arith.constant 0 : index
    %c0_1 = arith.constant 0 : index
    %0 = vector.load %arg1[%c0, %c0_0, %c0_1] : memref<1x8x32xf32, #tpu.memory_space<vmem>>, vector<1x8x32xf32>
    %1 = vector.shape_cast %0 : vector<1x8x32xf32> to vector<8x32xf32>
    %c0_2 = arith.constant 0 : index
    %c0_3 = arith.constant 0 : index
    %c0_4 = arith.constant 0 : index
    %2 = vector.load %arg3[%c0_2, %c0_3, %c0_4] : memref<1x8x1xf32, #tpu.memory_space<vmem>>, vector<1x8x1xf32>
    %3 = vector.shape_cast %2 : vector<1x8x1xf32> to vector<8x1xf32>
    %c0_5 = arith.constant 0 : index
    %c0_6 = arith.constant 0 : index
    %c0_7 = arith.constant 0 : index
    %4 = vector.load %arg2[%c0_5, %c0_6, %c0_7] : memref<1x1x8xf32, #tpu.memory_space<vmem>>, vector<1x1x8xf32>
    %5 = vector.shape_cast %4 : vector<1x1x8xf32> to vector<1x8xf32>
    %6 = vector.broadcast %3 : vector<8x1xf32> to vector<8x8xf32>
    %7 = vector.broadcast %5 : vector<1x8xf32> to vector<8x8xf32>
    %8 = arith.cmpf oeq, %6, %7 : vector<8x8xf32>
    %cst = arith.constant 0.000000e+00 : f32
    %cst_8 = arith.constant -1.000000e+30 : f32
    %9 = vector.broadcast %cst : f32 to vector<8x8xf32>
    %10 = vector.broadcast %cst_8 : f32 to vector<8x8xf32>
    %11 = arith.select %8, %9, %10 : vector<8x8xi1>, vector<8x8xf32>
    %c0_9 = arith.constant 0 : index
    %c0_10 = arith.constant 0 : index
    %12 = vector.load %arg4[%c0_9, %c0_10] : memref<1x32xf32, #tpu.memory_space<vmem>>, vector<1x32xf32>
    %c0_11 = arith.constant 0 : index
    %c0_12 = arith.constant 0 : index
    %13 = vector.load %arg5[%c0_11, %c0_12] : memref<1x32xf32, #tpu.memory_space<vmem>>, vector<1x32xf32>
    %cst_13 = arith.constant dense<0.000000e+00> : vector<8xf32>
    %14 = vector.multi_reduction <add>, %1, %cst_13 [1] : vector<8x32xf32> to vector<8xf32>
    %15 = vector.shape_cast %14 : vector<8xf32> to vector<8x1xf32>
    %cst_14 = arith.constant 3.200000e+01 : f32
    %16 = vector.broadcast %cst_14 : f32 to vector<8x1xf32>
    %17 = arith.divf %15, %16 : vector<8x1xf32>
    %18 = vector.broadcast %17 : vector<8x1xf32> to vector<8x32xf32>
    %19 = arith.subf %1, %18 : vector<8x32xf32>
    %20 = arith.mulf %19, %19 : vector<8x32xf32>
    %cst_15 = arith.constant dense<0.000000e+00> : vector<8xf32>
    %21 = vector.multi_reduction <add>, %20, %cst_15 [1] : vector<8x32xf32> to vector<8xf32>
    %22 = vector.shape_cast %21 : vector<8xf32> to vector<8x1xf32>
    %cst_16 = arith.constant 3.200000e+01 : f32
    %23 = vector.broadcast %cst_16 : f32 to vector<8x1xf32>
    %24 = arith.divf %22, %23 : vector<8x1xf32>
    %cst_17 = arith.constant 9.99999974E-6 : f32
    %25 = vector.broadcast %cst_17 : f32 to vector<8x1xf32>
    %26 = arith.addf %24, %25 : vector<8x1xf32>
    %27 = math.rsqrt %26 : vector<8x1xf32>
    %28 = vector.broadcast %27 : vector<8x1xf32> to vector<8x32xf32>
    %29 = arith.mulf %19, %28 : vector<8x32xf32>
    %30 = vector.broadcast %12 : vector<1x32xf32> to vector<8x32xf32>
    %31 = arith.mulf %29, %30 : vector<8x32xf32>
    %32 = vector.broadcast %13 : vector<1x32xf32> to vector<8x32xf32>
    %33 = arith.addf %31, %32 : vector<8x32xf32>
    %34 = arith.truncf %33 : vector<8x32xf32> to vector<8x32xbf16>
    %c0_18 = arith.constant 0 : index
    %c0_19 = arith.constant 0 : index
    %35 = vector.load %arg6[%c0_18, %c0_19] : memref<32x96xbf16, #tpu.memory_space<vmem>>, vector<32x96xbf16>
    %cst_20 = arith.constant dense<0.000000e+00> : vector<8x96xf32>
    %36 = tpu.matmul %34, %35, %cst_20 {dimension_numbers = #tpu.dot_dimension_numbers<[1], [0], [0], [1], [0, 0, 1, 1], [], []>} : vector<8x32xbf16>, vector<32x96xbf16>, vector<8x96xf32> -> vector<8x96xf32>
    %37 = vector.extract_strided_slice %36 {offsets = [0, 0], sizes = [8, 32], strides = [1, 1]} : vector<8x96xf32> to vector<8x32xf32>
    %c0_21 = arith.constant 0 : index
    %c0_22 = arith.constant 0 : index
    %38 = vector.load %arg7[%c0_21, %c0_22] : memref<1x32xf32, #tpu.memory_space<vmem>>, vector<1x32xf32>
    %cst_23 = arith.constant dense<0.000000e+00> : vector<8xf32>
    %39 = vector.multi_reduction <add>, %37, %cst_23 [1] : vector<8x32xf32> to vector<8xf32>
    %40 = vector.shape_cast %39 : vector<8xf32> to vector<8x1xf32>
    %cst_24 = arith.constant 3.200000e+01 : f32
    %41 = vector.broadcast %cst_24 : f32 to vector<8x1xf32>
    %42 = arith.divf %40, %41 : vector<8x1xf32>
    %43 = vector.broadcast %42 : vector<8x1xf32> to vector<8x32xf32>
    %44 = arith.subf %37, %43 : vector<8x32xf32>
    %45 = arith.mulf %44, %44 : vector<8x32xf32>
    %cst_25 = arith.constant dense<0.000000e+00> : vector<8xf32>
    %46 = vector.multi_reduction <add>, %45, %cst_25 [1] : vector<8x32xf32> to vector<8xf32>
    %47 = vector.shape_cast %46 : vector<8xf32> to vector<8x1xf32>
    %cst_26 = arith.constant 3.200000e+01 : f32
    %48 = vector.broadcast %cst_26 : f32 to vector<8x1xf32>
    %49 = arith.divf %47, %48 : vector<8x1xf32>
    %cst_27 = arith.constant 9.99999974E-6 : f32
    %50 = vector.broadcast %cst_27 : f32 to vector<8x1xf32>
    %51 = arith.addf %49, %50 : vector<8x1xf32>
    %52 = math.rsqrt %51 : vector<8x1xf32>
    %53 = vector.broadcast %52 : vector<8x1xf32> to vector<8x32xf32>
    %54 = arith.mulf %44, %53 : vector<8x32xf32>
    %55 = vector.broadcast %38 : vector<1x32xf32> to vector<8x32xf32>
    %56 = arith.mulf %54, %55 : vector<8x32xf32>
    %cst_28 = arith.constant 0.000000e+00 : f32
    %57 = vector.broadcast %cst_28 : f32 to vector<8x32xf32>
    %58 = arith.addf %56, %57 : vector<8x32xf32>
    %59 = vector.extract_strided_slice %36 {offsets = [0, 32], sizes = [8, 32], strides = [1, 1]} : vector<8x96xf32> to vector<8x32xf32>
    %c0_29 = arith.constant 0 : index
    %c0_30 = arith.constant 0 : index
    %60 = vector.load %arg8[%c0_29, %c0_30] : memref<1x32xf32, #tpu.memory_space<vmem>>, vector<1x32xf32>
    %cst_31 = arith.constant dense<0.000000e+00> : vector<8xf32>
    %61 = vector.multi_reduction <add>, %59, %cst_31 [1] : vector<8x32xf32> to vector<8xf32>
    %62 = vector.shape_cast %61 : vector<8xf32> to vector<8x1xf32>
    %cst_32 = arith.constant 3.200000e+01 : f32
    %63 = vector.broadcast %cst_32 : f32 to vector<8x1xf32>
    %64 = arith.divf %62, %63 : vector<8x1xf32>
    %65 = vector.broadcast %64 : vector<8x1xf32> to vector<8x32xf32>
    %66 = arith.subf %59, %65 : vector<8x32xf32>
    %67 = arith.mulf %66, %66 : vector<8x32xf32>
    %cst_33 = arith.constant dense<0.000000e+00> : vector<8xf32>
    %68 = vector.multi_reduction <add>, %67, %cst_33 [1] : vector<8x32xf32> to vector<8xf32>
    %69 = vector.shape_cast %68 : vector<8xf32> to vector<8x1xf32>
    %cst_34 = arith.constant 3.200000e+01 : f32
    %70 = vector.broadcast %cst_34 : f32 to vector<8x1xf32>
    %71 = arith.divf %69, %70 : vector<8x1xf32>
    %cst_35 = arith.constant 9.99999974E-6 : f32
    %72 = vector.broadcast %cst_35 : f32 to vector<8x1xf32>
    %73 = arith.addf %71, %72 : vector<8x1xf32>
    %74 = math.rsqrt %73 : vector<8x1xf32>
    %75 = vector.broadcast %74 : vector<8x1xf32> to vector<8x32xf32>
    %76 = arith.mulf %66, %75 : vector<8x32xf32>
    %77 = vector.broadcast %60 : vector<1x32xf32> to vector<8x32xf32>
    %78 = arith.mulf %76, %77 : vector<8x32xf32>
    %cst_36 = arith.constant 0.000000e+00 : f32
    %79 = vector.broadcast %cst_36 : f32 to vector<8x32xf32>
    %80 = arith.addf %78, %79 : vector<8x32xf32>
    %81 = vector.extract_strided_slice %36 {offsets = [0, 64], sizes = [8, 32], strides = [1, 1]} : vector<8x96xf32> to vector<8x32xf32>
    %c0_37 = arith.constant 0 : index
    %c0_38 = arith.constant 0 : index
    %82 = vector.load %arg9[%c0_37, %c0_38] : memref<8x16xf32, #tpu.memory_space<vmem>>, vector<8x16xf32>
    %c0_39 = arith.constant 0 : index
    %c0_40 = arith.constant 0 : index
    %83 = vector.load %arg10[%c0_39, %c0_40] : memref<8x16xf32, #tpu.memory_space<vmem>>, vector<8x16xf32>
    %84 = vector.shape_cast %58 : vector<8x32xf32> to vector<8x2x16xf32>
    %85 = tpu.transpose %84, [1, 0, 2] : vector<8x2x16xf32> -> vector<2x8x16xf32>
    %86 = vector.extract_strided_slice %85 {offsets = [0, 0, 8], sizes = [2, 8, 8], strides = [1, 1, 1]} : vector<2x8x16xf32> to vector<2x8x8xf32>
    %cst_41 = arith.constant 0.000000e+00 : f32
    %87 = vector.broadcast %cst_41 : f32 to vector<2x8x8xf32>
    %88 = arith.subf %87, %86 : vector<2x8x8xf32>
    %89 = vector.extract_strided_slice %85 {offsets = [0, 0, 0], sizes = [2, 8, 8], strides = [1, 1, 1]} : vector<2x8x16xf32> to vector<2x8x8xf32>
    %90 = tpu.concatenate %88, %89 in 2 : vector<2x8x8xf32>, vector<2x8x8xf32> -> vector<2x8x16xf32>
    %91 = vector.shape_cast %82 : vector<8x16xf32> to vector<1x8x16xf32>
    %92 = vector.broadcast %91 : vector<1x8x16xf32> to vector<2x8x16xf32>
    %93 = arith.mulf %85, %92 : vector<2x8x16xf32>
    %94 = vector.shape_cast %83 : vector<8x16xf32> to vector<1x8x16xf32>
    %95 = vector.broadcast %94 : vector<1x8x16xf32> to vector<2x8x16xf32>
    %96 = arith.mulf %90, %95 : vector<2x8x16xf32>
    %97 = arith.addf %93, %96 : vector<2x8x16xf32>
    %cst_42 = arith.constant 2.500000e-01 : f32
    %98 = vector.broadcast %cst_42 : f32 to vector<2x8x16xf32>
    %99 = arith.mulf %97, %98 : vector<2x8x16xf32>
    %100 = vector.shape_cast %80 : vector<8x32xf32> to vector<8x2x16xf32>
    %101 = tpu.transpose %100, [1, 0, 2] : vector<8x2x16xf32> -> vector<2x8x16xf32>
    %102 = vector.extract_strided_slice %101 {offsets = [0, 0, 8], sizes = [2, 8, 8], strides = [1, 1, 1]} : vector<2x8x16xf32> to vector<2x8x8xf32>
    %cst_43 = arith.constant 0.000000e+00 : f32
    %103 = vector.broadcast %cst_43 : f32 to vector<2x8x8xf32>
    %104 = arith.subf %103, %102 : vector<2x8x8xf32>
    %105 = vector.extract_strided_slice %101 {offsets = [0, 0, 0], sizes = [2, 8, 8], strides = [1, 1, 1]} : vector<2x8x16xf32> to vector<2x8x8xf32>
    %106 = tpu.concatenate %104, %105 in 2 : vector<2x8x8xf32>, vector<2x8x8xf32> -> vector<2x8x16xf32>
    %107 = vector.shape_cast %82 : vector<8x16xf32> to vector<1x8x16xf32>
    %108 = vector.broadcast %107 : vector<1x8x16xf32> to vector<2x8x16xf32>
    %109 = arith.mulf %101, %108 : vector<2x8x16xf32>
    %110 = vector.shape_cast %83 : vector<8x16xf32> to vector<1x8x16xf32>
    %111 = vector.broadcast %110 : vector<1x8x16xf32> to vector<2x8x16xf32>
    %112 = arith.mulf %106, %111 : vector<2x8x16xf32>
    %113 = arith.addf %109, %112 : vector<2x8x16xf32>
    %114 = vector.shape_cast %81 : vector<8x32xf32> to vector<8x2x16xf32>
    %115 = tpu.transpose %114, [1, 0, 2] : vector<8x2x16xf32> -> vector<2x8x16xf32>
    %116 = arith.truncf %99 : vector<2x8x16xf32> to vector<2x8x16xbf16>
    %117 = arith.truncf %113 : vector<2x8x16xf32> to vector<2x8x16xbf16>
    "tpu.trace_start"() <{level = 10 : i32, message = "hqd,hkd->hqk"}> : () -> ()
    %cst_44 = arith.constant dense<0.000000e+00> : vector<2x8x8xf32>
    %118 = tpu.matmul %116, %117, %cst_44 {dimension_numbers = #tpu.dot_dimension_numbers<[2], [2], [1], [1], [0, 0, 0, 1, 1, 1], [0], [0]>} : vector<2x8x16xbf16>, vector<2x8x16xbf16>, vector<2x8x8xf32> -> vector<2x8x8xf32>
    "tpu.trace_stop"() : () -> ()
    %119 = vector.shape_cast %11 : vector<8x8xf32> to vector<1x8x8xf32>
    %120 = vector.broadcast %119 : vector<1x8x8xf32> to vector<2x8x8xf32>
    %121 = arith.addf %118, %120 : vector<2x8x8xf32>
    %cst_45 = arith.constant dense<0xFF800000> : vector<2x8xf32>
    %122 = vector.multi_reduction <maximumf>, %121, %cst_45 [2] : vector<2x8x8xf32> to vector<2x8xf32>
    %123 = vector.shape_cast %122 : vector<2x8xf32> to vector<2x8x1xf32>
    %124 = vector.broadcast %123 : vector<2x8x1xf32> to vector<2x8x8xf32>
    %125 = arith.subf %121, %124 : vector<2x8x8xf32>
    %126 = math.exp %125 : vector<2x8x8xf32>
    %cst_46 = arith.constant dense<0.000000e+00> : vector<2x8xf32>
    %127 = vector.multi_reduction <add>, %126, %cst_46 [2] : vector<2x8x8xf32> to vector<2x8xf32>
    %128 = vector.shape_cast %127 : vector<2x8xf32> to vector<2x8x1xf32>
    %129 = tpu.reciprocal %128 {approx = true} : vector<2x8x1xf32> -> vector<2x8x1xf32>
    %130 = vector.broadcast %129 : vector<2x8x1xf32> to vector<2x8x8xf32>
    %131 = arith.mulf %126, %130 : vector<2x8x8xf32>
    %132 = arith.truncf %131 : vector<2x8x8xf32> to vector<2x8x8xbf16>
    %133 = arith.truncf %115 : vector<2x8x16xf32> to vector<2x8x16xbf16>
    "tpu.trace_start"() <{level = 10 : i32, message = "hqk,hkd->hqd"}> : () -> ()
    %cst_47 = arith.constant dense<0.000000e+00> : vector<2x8x16xf32>
    %134 = tpu.matmul %132, %133, %cst_47 {dimension_numbers = #tpu.dot_dimension_numbers<[2], [1], [1], [2], [0, 0, 0, 1, 1, 2], [0], [0]>} : vector<2x8x8xbf16>, vector<2x8x16xbf16>, vector<2x8x16xf32> -> vector<2x8x16xf32>
    "tpu.trace_stop"() : () -> ()
    %135 = tpu.transpose %134, [1, 0, 2] : vector<2x8x16xf32> -> vector<8x2x16xf32>
    %136 = vector.shape_cast %135 : vector<8x2x16xf32> to vector<8x32xf32>
    %137 = arith.truncf %136 : vector<8x32xf32> to vector<8x32xbf16>
    %c0_48 = arith.constant 0 : index
    %c0_49 = arith.constant 0 : index
    %138 = vector.load %arg11[%c0_48, %c0_49] : memref<32x32xbf16, #tpu.memory_space<vmem>>, vector<32x32xbf16>
    %cst_50 = arith.constant dense<0.000000e+00> : vector<8x32xf32>
    %139 = tpu.matmul %137, %138, %cst_50 {dimension_numbers = #tpu.dot_dimension_numbers<[1], [0], [0], [1], [0, 0, 1, 1], [], []>} : vector<8x32xbf16>, vector<32x32xbf16>, vector<8x32xf32> -> vector<8x32xf32>
    %cst_51 = arith.constant 4.2426405 : f32
    %140 = vector.broadcast %cst_51 : f32 to vector<8x32xf32>
    %141 = arith.mulf %139, %140 : vector<8x32xf32>
    %142 = arith.addf %1, %141 : vector<8x32xf32>
    %c0_52 = arith.constant 0 : index
    %c0_53 = arith.constant 0 : index
    %143 = vector.load %arg12[%c0_52, %c0_53] : memref<1x32xf32, #tpu.memory_space<vmem>>, vector<1x32xf32>
    %c0_54 = arith.constant 0 : index
    %c0_55 = arith.constant 0 : index
    %144 = vector.load %arg13[%c0_54, %c0_55] : memref<1x32xf32, #tpu.memory_space<vmem>>, vector<1x32xf32>
    %cst_56 = arith.constant dense<0.000000e+00> : vector<8xf32>
    %145 = vector.multi_reduction <add>, %142, %cst_56 [1] : vector<8x32xf32> to vector<8xf32>
    %146 = vector.shape_cast %145 : vector<8xf32> to vector<8x1xf32>
    %cst_57 = arith.constant 3.200000e+01 : f32
    %147 = vector.broadcast %cst_57 : f32 to vector<8x1xf32>
    %148 = arith.divf %146, %147 : vector<8x1xf32>
    %149 = vector.broadcast %148 : vector<8x1xf32> to vector<8x32xf32>
    %150 = arith.subf %142, %149 : vector<8x32xf32>
    %151 = arith.mulf %150, %150 : vector<8x32xf32>
    %cst_58 = arith.constant dense<0.000000e+00> : vector<8xf32>
    %152 = vector.multi_reduction <add>, %151, %cst_58 [1] : vector<8x32xf32> to vector<8xf32>
    %153 = vector.shape_cast %152 : vector<8xf32> to vector<8x1xf32>
    %cst_59 = arith.constant 3.200000e+01 : f32
    %154 = vector.broadcast %cst_59 : f32 to vector<8x1xf32>
    %155 = arith.divf %153, %154 : vector<8x1xf32>
    %cst_60 = arith.constant 9.99999974E-6 : f32
    %156 = vector.broadcast %cst_60 : f32 to vector<8x1xf32>
    %157 = arith.addf %155, %156 : vector<8x1xf32>
    %158 = math.rsqrt %157 : vector<8x1xf32>
    %159 = vector.broadcast %158 : vector<8x1xf32> to vector<8x32xf32>
    %160 = arith.mulf %150, %159 : vector<8x32xf32>
    %161 = vector.broadcast %143 : vector<1x32xf32> to vector<8x32xf32>
    %162 = arith.mulf %160, %161 : vector<8x32xf32>
    %163 = vector.broadcast %144 : vector<1x32xf32> to vector<8x32xf32>
    %164 = arith.addf %162, %163 : vector<8x32xf32>
    %165 = arith.truncf %164 : vector<8x32xf32> to vector<8x32xbf16>
    %c0_61 = arith.constant 0 : index
    %c0_62 = arith.constant 0 : index
    %166 = vector.load %arg14[%c0_61, %c0_62] : memref<32x512xbf16, #tpu.memory_space<vmem>>, vector<32x512xbf16>
    %cst_63 = arith.constant dense<0.000000e+00> : vector<8x512xf32>
    %167 = tpu.matmul %165, %166, %cst_63 {dimension_numbers = #tpu.dot_dimension_numbers<[1], [0], [0], [1], [0, 0, 1, 1], [], []>} : vector<8x32xbf16>, vector<32x512xbf16>, vector<8x512xf32> -> vector<8x512xf32>
    %168 = vector.extract_strided_slice %167 {offsets = [0, 0], sizes = [8, 256], strides = [1, 1]} : vector<8x512xf32> to vector<8x256xf32>
    %169 = vector.extract_strided_slice %167 {offsets = [0, 256], sizes = [8, 256], strides = [1, 1]} : vector<8x512xf32> to vector<8x256xf32>
    %170 = arith.negf %168 : vector<8x256xf32>
    %171 = math.exp %170 : vector<8x256xf32>
    %cst_64 = arith.constant 1.000000e+00 : f32
    %172 = vector.broadcast %cst_64 : f32 to vector<8x256xf32>
    %173 = arith.addf %172, %171 : vector<8x256xf32>
    %174 = arith.divf %172, %173 : vector<8x256xf32>
    %175 = arith.mulf %168, %174 : vector<8x256xf32>
    %176 = arith.mulf %175, %169 : vector<8x256xf32>
    %177 = arith.truncf %176 : vector<8x256xf32> to vector<8x256xbf16>
    %c0_65 = arith.constant 0 : index
    %c0_66 = arith.constant 0 : index
    %178 = vector.load %arg15[%c0_65, %c0_66] : memref<256x32xbf16, #tpu.memory_space<vmem>>, vector<256x32xbf16>
    %cst_67 = arith.constant dense<0.000000e+00> : vector<8x32xf32>
    %179 = tpu.matmul %177, %178, %cst_67 {dimension_numbers = #tpu.dot_dimension_numbers<[1], [0], [0], [1], [0, 0, 1, 1], [], []>} : vector<8x256xbf16>, vector<256x32xbf16>, vector<8x32xf32> -> vector<8x32xf32>
    %cst_68 = arith.constant 4.2426405 : f32
    %180 = vector.broadcast %cst_68 : f32 to vector<8x32xf32>
    %181 = arith.mulf %179, %180 : vector<8x32xf32>
    %182 = arith.addf %142, %181 : vector<8x32xf32>
    %c0_69 = arith.constant 0 : index
    %c0_70 = arith.constant 0 : index
    %c0_71 = arith.constant 0 : index
    %183 = vector.load %arg16[%c0_69, %c0_70, %c0_71] : memref<1x8x32xf32, #tpu.memory_space<vmem>>, vector<1x8x32xf32>
    %184 = vector.shape_cast %183 : vector<1x8x32xf32> to vector<8x32xf32>
    %185 = vector.shape_cast %182 : vector<8x32xf32> to vector<1x8x32xf32>
    tpu.vector_store %arg16[%c0_69, %c0_70, %c0_71], %185 {strides = array<i32>} : memref<1x8x32xf32, #tpu.memory_space<vmem>>, vector<1x8x32xf32>,
    return
  }
  func.func @transform_0(%arg0: i32) -> (i32, i32, i32) {
    %c0_i32 = arith.constant 0 : i32
    %c0_i32_0 = arith.constant 0 : i32
    %c0_i32_1 = arith.constant 0 : i32
    return %arg0, %c0_i32, %c0_i32_0 : i32, i32, i32
  }
  func.func @transform_1(%arg0: i32) -> (i32, i32, i32) {
    %c0_i32 = arith.constant 0 : i32
    %c0_i32_0 = arith.constant 0 : i32
    %c0_i32_1 = arith.constant 0 : i32
    return %arg0, %c0_i32, %c0_i32_0 : i32, i32, i32
  }
  func.func @transform_2(%arg0: i32) -> (i32, i32, i32) {
    %c0_i32 = arith.constant 0 : i32
    %c0_i32_0 = arith.constant 0 : i32
    %c0_i32_1 = arith.constant 0 : i32
    return %arg0, %c0_i32, %c0_i32_0 : i32, i32, i32
  }
  func.func @transform_3(%arg0: i32) -> (i32, i32) {
    %c0_i32 = arith.constant 0 : i32
    %c0_i32_0 = arith.constant 0 : i32
    %c0_i32_1 = arith.constant 0 : i32
    return %c0_i32, %c0_i32_0 : i32, i32
  }
  func.func @transform_4(%arg0: i32) -> (i32, i32) {
    %c0_i32 = arith.constant 0 : i32
    %c0_i32_0 = arith.constant 0 : i32
    %c0_i32_1 = arith.constant 0 : i32
    return %c0_i32, %c0_i32_0 : i32, i32
  }
  func.func @transform_5(%arg0: i32) -> (i32, i32) {
    %c0_i32 = arith.constant 0 : i32
    %c0_i32_0 = arith.constant 0 : i32
    %c0_i32_1 = arith.constant 0 : i32
    return %c0_i32, %c0_i32_0 : i32, i32
  }
  func.func @transform_6(%arg0: i32) -> (i32, i32) {
    %c0_i32 = arith.constant 0 : i32
    %c0_i32_0 = arith.constant 0 : i32
    %c0_i32_1 = arith.constant 0 : i32
    return %c0_i32, %c0_i32_0 : i32, i32
  }
  func.func @transform_7(%arg0: i32) -> (i32, i32) {
    %c0_i32 = arith.constant 0 : i32
    %c0_i32_0 = arith.constant 0 : i32
    %c0_i32_1 = arith.constant 0 : i32
    return %c0_i32, %c0_i32_0 : i32, i32
  }
  func.func @transform_8(%arg0: i32) -> (i32, i32) {
    %c0_i32 = arith.constant 0 : i32
    %c0_i32_0 = arith.constant 0 : i32
    %c0_i32_1 = arith.constant 0 : i32
    return %c0_i32, %c0_i32_0 : i32, i32
  }
  func.func @transform_9(%arg0: i32) -> (i32, i32) {
    %c0_i32 = arith.constant 0 : i32
    %c0_i32_0 = arith.constant 0 : i32
    %c0_i32_1 = arith.constant 0 : i32
    return %c0_i32, %c0_i32_0 : i32, i32
  }
  func.func @transform_10(%arg0: i32) -> (i32, i32) {
    %c0_i32 = arith.constant 0 : i32
    %c0_i32_0 = arith.constant 0 : i32
    %c0_i32_1 = arith.constant 0 : i32
    return %c0_i32, %c0_i32_0 : i32, i32
  }
  func.func @transform_11(%arg0: i32) -> (i32, i32) {
    %c0_i32 = arith.constant 0 : i32
    %c0_i32_0 = arith.constant 0 : i32
    %c0_i32_1 = arith.constant 0 : i32
    return %c0_i32, %c0_i32_0 : i32, i32
  }
  func.func @transform_12(%arg0: i32) -> (i32, i32) {
    %c0_i32 = arith.constant 0 : i32
    %c0_i32_0 = arith.constant 0 : i32
    %c0_i32_1 = arith.constant 0 : i32
    return %c0_i32, %c0_i32_0 : i32, i32
  }
  func.func @transform_13(%arg0: i32) -> (i32, i32) {
    %c0_i32 = arith.constant 0 : i32
    %c0_i32_0 = arith.constant 0 : i32
    %c0_i32_1 = arith.constant 0 : i32
    return %c0_i32, %c0_i32_0 : i32, i32
  }
  func.func @transform_14(%arg0: i32) -> (i32, i32) {
    %c0_i32 = arith.constant 0 : i32
    %c0_i32_0 = arith.constant 0 : i32
    %c0_i32_1 = arith.constant 0 : i32
    return %c0_i32, %c0_i32_0 : i32, i32
  }
  func.func @transform_15(%arg0: i32) -> (i32, i32, i32) {
    %c0_i32 = arith.constant 0 : i32
    %c0_i32_0 = arith.constant 0 : i32
    %c0_i32_1 = arith.constant 0 : i32
    return %arg0, %c0_i32, %c0_i32_0 : i32, i32, i32
  }
}

</mosaic_0001>

<llo_original>
// kernel: tpu_custom_call.1
$region0: #{tpu_custom_call.1}
  #allocation0 [shape = 'u32[]', space=smem, size = 0x4, offset = 0x4, fixed_abs, tag = 'smem constant byte address 0x4 - core index']
  #allocation1 [shape = 'u32[72,128]{1,0:T(1,128)}', space=vmem, size = 0x9000, scoped, tag = 'internal scratch']
  %s0 = inlined_call_operand.vmem [shape: f32[2,8,32], index: 0, kind: input, shape index: {}]
  %s1 = inlined_call_operand.vmem [shape: f32[2,1,8], index: 1, kind: input, shape index: {}]
  %s2 = inlined_call_operand.vmem [shape: f32[2,8,1], index: 2, kind: input, shape index: {}]
  %s3 = inlined_call_operand.vmem [shape: f32[1,32], index: 3, kind: input, shape index: {}]
  %s4 = inlined_call_operand.vmem [shape: f32[1,32], index: 4, kind: input, shape index: {}]
  %s5 = inlined_call_operand.vmem [shape: bf16[32,96], index: 5, kind: input, shape index: {}]
  %s6 = inlined_call_operand.vmem [shape: f32[1,32], index: 6, kind: input, shape index: {}]
  %s7 = inlined_call_operand.vmem [shape: f32[1,32], index: 7, kind: input, shape index: {}]
  %s8 = inlined_call_operand.vmem [shape: f32[8,16], index: 8, kind: input, shape index: {}]
  %s9 = inlined_call_operand.vmem [shape: f32[8,16], index: 9, kind: input, shape index: {}]
  %s10 = inlined_call_operand.vmem [shape: bf16[32,32], index: 10, kind: input, shape index: {}]
  %s11 = inlined_call_operand.vmem [shape: f32[1,32], index: 11, kind: input, shape index: {}]
  %s12 = inlined_call_operand.vmem [shape: f32[1,32], index: 12, kind: input, shape index: {}]
  %s13 = inlined_call_operand.vmem [shape: bf16[32,512], index: 13, kind: input, shape index: {}]
  %s14 = inlined_call_operand.vmem [shape: bf16[256,32], index: 14, kind: input, shape index: {}]
  %s15 = inlined_call_operand.hbm [shape: f32[2,8,32], index: 15, kind: output, shape index: {}]
  %s16 = sld [smem:[#allocation0]]
  $region93: #{tpu_custom_call.1} parent=0
    _
  %s18 = ssub.s32 1, %s16
  %s19 = scalar_select 0, %s18, %s16
  $region1: #{tpu_custom_call.1} parent=0
    #allocation2 [shape = 'u8[8192]{0}', space=vmem, size = 0x2000, scoped, tag = 'output window, operand 0']
    #allocation3 [shape = 's32[2]{0}', space=sflag, size = 0x8, scoped, tag = 'scoped memory for tpu_custom_call.1']
    %20 = vsyncpa [#allocation3], 0
    %s21 = scalar_lea.sflag [#allocation3], 1
    %22 = vsyncpa %s21, 0
    loop: start=0, step=1, limit=4
    $region2: #{tpu_custom_call.1} parent=1 // loop_pre_header
      _
    $region3: #{tpu_custom_call.1} parent=1 // loop_header
      %s24 = sphi 0, %s28
      %p25 = scmp.ge.s32.totalorder %s24, 4
      %s34 = sphi 0, %s36
      %s37 = sphi 0, %s34
      %s38 = sphi 0, %s37
      %s54 = sphi 0, %s38
      %s60 = sphi 0, %s62
      %s63 = sphi 0, %s60
      %s64 = sphi 0, %s63
      %s80 = sphi 0, %s64
      %s86 = sphi 0, %s88
      %s89 = sphi 0, %s86
      %s90 = sphi 0, %s89
      %s106 = sphi 0, %s90
      %s110 = sphi 0, %s110
      %s112 = sphi 0, %s110
      %s113 = sphi 0, %s112
      %s127 = sphi 0, %s113
      %s131 = sphi 0, %s131
      %s133 = sphi 0, %s131
      %s134 = sphi 0, %s133
      %s148 = sphi 0, %s134
      %s152 = sphi 0, %s152
      %s154 = sphi 0, %s152
      %s155 = sphi 0, %s154
      %s169 = sphi 0, %s155
      %s173 = sphi 0, %s173
      %s175 = sphi 0, %s173
      %s176 = sphi 0, %s175
      %s190 = sphi 0, %s176
      %s194 = sphi 0, %s194
      %s196 = sphi 0, %s194
      %s197 = sphi 0, %s196
      %s211 = sphi 0, %s197
      %s215 = sphi 0, %s215
      %s217 = sphi 0, %s215
      %s218 = sphi 0, %s217
      %s232 = sphi 0, %s218
      %s236 = sphi 0, %s236
      %s238 = sphi 0, %s236
      %s239 = sphi 0, %s238
      %s253 = sphi 0, %s239
      %s257 = sphi 0, %s257
      %s259 = sphi 0, %s257
      %s260 = sphi 0, %s259
      %s274 = sphi 0, %s260
      %s278 = sphi 0, %s278
      %s280 = sphi 0, %s278
      %s281 = sphi 0, %s280
      %s295 = sphi 0, %s281
      %s299 = sphi 0, %s299
      %s301 = sphi 0, %s299
      %s302 = sphi 0, %s301
      %s316 = sphi 0, %s302
      %s320 = sphi 0, %s320
      %s322 = sphi 0, %s320
      %s323 = sphi 0, %s322
      %s337 = sphi 0, %s323
      %s341 = sphi 0, %s341
      %s343 = sphi 0, %s341
      %s344 = sphi 0, %s343
      %s358 = sphi 0, %s344
      %s364 = sphi 0, %s366
      %s367 = sphi 0, %s364
      %s368 = sphi 0, %s367
      %s384 = sphi 0, %s368
    $region4: #{tpu_custom_call.1} parent=1 // loop_header_branch
      %27 = sbr.rel (%p25) target = $region8
    $region5: #{tpu_custom_call.1} parent=1 // loop_body
      %s29 = ssub.s32 %s24, 1
      %s30 = ssub.s32 %s24, 2
      %s31 = sadd.s32 %s24, 1
      %s32 = ssub.s32 %s24, %s31
      %p33 = scmp.eq.s32.totalorder %s32, 0
      %s35 = sadd.s32 %s34, 1
      %s36 = scalar_select %p33, %s34, %s35
      %p39 = pneg %p33
      %p40 = scmp.eq.s32.totalorder %s24, 1
      %p41 = por %p39, %p40
      %p42 = scmp.ne.s32.totalorder %s34, %s37
      %p43 = scmp.eq.s32.totalorder %s24, 0
      %p44 = por %p42, %p43
      %p45 = scmp.ne.s32.totalorder %s34, %s37
      %p46 = scmp.eq.s32.totalorder %s29, 1
      %p47 = por %p45, %p46
      %p48 = scmp.ne.s32.totalorder %s37, %s38
      %p49 = scmp.eq.s32.totalorder %s29, 0
      %p50 = por %p48, %p49
      %p51 = scmp.ne.s32.totalorder %s37, %s38
      %p52 = scmp.eq.s32.totalorder %s30, 1
      %p53 = por %p51, %p52
      %p55 = scmp.ne.s32.totalorder %s38, %s54
      %p56 = scmp.eq.s32.totalorder %s30, 0
      %p57 = por %p55, %p56
      %s58 = ssub.s32 %s24, %s31
      %p59 = scmp.eq.s32.totalorder %s58, 0
      %s61 = sadd.s32 %s60, 1
      %s62 = scalar_select %p59, %s60, %s61
      %p65 = pneg %p59
      %p66 = scmp.eq.s32.totalorder %s24, 1
      %p67 = por %p65, %p66
      %p68 = scmp.ne.s32.totalorder %s60, %s63
      %p69 = scmp.eq.s32.totalorder %s24, 0
      %p70 = por %p68, %p69
      %p71 = scmp.ne.s32.totalorder %s60, %s63
      %p72 = scmp.eq.s32.totalorder %s29, 1
      %p73 = por %p71, %p72
      %p74 = scmp.ne.s32.totalorder %s63, %s64
      %p75 = scmp.eq.s32.totalorder %s29, 0
      %p76 = por %p74, %p75
      %p77 = scmp.ne.s32.totalorder %s63, %s64
      %p78 = scmp.eq.s32.totalorder %s30, 1
      %p79 = por %p77, %p78
      %p81 = scmp.ne.s32.totalorder %s64, %s80
      %p82 = scmp.eq.s32.totalorder %s30, 0
      %p83 = por %p81, %p82
      %s84 = ssub.s32 %s24, %s31
      %p85 = scmp.eq.s32.totalorder %s84, 0
      %s87 = sadd.s32 %s86, 1
      %s88 = scalar_select %p85, %s86, %s87
      %p91 = pneg %p85
      %p92 = scmp.eq.s32.totalorder %s24, 1
      %p93 = por %p91, %p92
      %p94 = scmp.ne.s32.totalorder %s86, %s89
      %p95 = scmp.eq.s32.totalorder %s24, 0
      %p96 = por %p94, %p95
      %p97 = scmp.ne.s32.totalorder %s86, %s89
      %p98 = scmp.eq.s32.totalorder %s29, 1
      %p99 = por %p97, %p98
      %p100 = scmp.ne.s32.totalorder %s89, %s90
      %p101 = scmp.eq.s32.totalorder %s29, 0
      %p102 = por %p100, %p101
      %p103 = scmp.ne.s32.totalorder %s89, %s90
      %p104 = scmp.eq.s32.totalorder %s30, 1
      %p105 = por %p103, %p104
      %p107 = scmp.ne.s32.totalorder %s90, %s106
      %p108 = scmp.eq.s32.totalorder %s30, 0
      %p109 = por %p107, %p108
      %s111 = sadd.s32 %s110, 1
      %p114 = scmp.eq.s32.totalorder %s24, 1
      %p115 = scmp.ne.s32.totalorder %s110, %s112
      %p116 = scmp.eq.s32.totalorder %s24, 0
      %p117 = por %p115, %p116
      %p118 = scmp.ne.s32.totalorder %s110, %s112
      %p119 = scmp.eq.s32.totalorder %s29, 1
      %p120 = por %p118, %p119
      %p121 = scmp.ne.s32.totalorder %s112, %s113
      %p122 = scmp.eq.s32.totalorder %s29, 0
      %p123 = por %p121, %p122
      %p124 = scmp.ne.s32.totalorder %s112, %s113
      %p125 = scmp.eq.s32.totalorder %s30, 1
      %p126 = por %p124, %p125
      %p128 = scmp.ne.s32.totalorder %s113, %s127
      %p129 = scmp.eq.s32.totalorder %s30, 0
      %p130 = por %p128, %p129
      %s132 = sadd.s32 %s131, 1
      %p135 = scmp.eq.s32.totalorder %s24, 1
      %p136 = scmp.ne.s32.totalorder %s131, %s133
      %p137 = scmp.eq.s32.totalorder %s24, 0
      %p138 = por %p136, %p137
      %p139 = scmp.ne.s32.totalorder %s131, %s133
      %p140 = scmp.eq.s32.totalorder %s29, 1
      %p141 = por %p139, %p140
      %p142 = scmp.ne.s32.totalorder %s133, %s134
      %p143 = scmp.eq.s32.totalorder %s29, 0
      %p144 = por %p142, %p143
      %p145 = scmp.ne.s32.totalorder %s133, %s134
      %p146 = scmp.eq.s32.totalorder %s30, 1
      %p147 = por %p145, %p146
      %p149 = scmp.ne.s32.totalorder %s134, %s148
      %p150 = scmp.eq.s32.totalorder %s30, 0
      %p151 = por %p149, %p150
      %s153 = sadd.s32 %s152, 1
      %p156 = scmp.eq.s32.totalorder %s24, 1
      %p157 = scmp.ne.s32.totalorder %s152, %s154
      %p158 = scmp.eq.s32.totalorder %s24, 0
      %p159 = por %p157, %p158
      %p160 = scmp.ne.s32.totalorder %s152, %s154
      %p161 = scmp.eq.s32.totalorder %s29, 1
      %p162 = por %p160, %p161
      %p163 = scmp.ne.s32.totalorder %s154, %s155
      %p164 = scmp.eq.s32.totalorder %s29, 0
      %p165 = por %p163, %p164
      %p166 = scmp.ne.s32.totalorder %s154, %s155
      %p167 = scmp.eq.s32.totalorder %s30, 1
      %p168 = por %p166, %p167
      %p170 = scmp.ne.s32.totalorder %s155, %s169
      %p171 = scmp.eq.s32.totalorder %s30, 0
      %p172 = por %p170, %p171
      %s174 = sadd.s32 %s173, 1
      %p177 = scmp.eq.s32.totalorder %s24, 1
      %p178 = scmp.ne.s32.totalorder %s173, %s175
      %p179 = scmp.eq.s32.totalorder %s24, 0
      %p180 = por %p178, %p179
      %p181 = scmp.ne.s32.totalorder %s173, %s175
      %p182 = scmp.eq.s32.totalorder %s29, 1
      %p183 = por %p181, %p182
      %p184 = scmp.ne.s32.totalorder %s175, %s176
      %p185 = scmp.eq.s32.totalorder %s29, 0
      %p186 = por %p184, %p185
      %p187 = scmp.ne.s32.totalorder %s175, %s176
      %p188 = scmp.eq.s32.totalorder %s30, 1
      %p189 = por %p187, %p188
      %p191 = scmp.ne.s32.totalorder %s176, %s190
      %p192 = scmp.eq.s32.totalorder %s30, 0
      %p193 = por %p191, %p192
      %s195 = sadd.s32 %s194, 1
      %p198 = scmp.eq.s32.totalorder %s24, 1
      %p199 = scmp.ne.s32.totalorder %s194, %s196
      %p200 = scmp.eq.s32.totalorder %s24, 0
      %p201 = por %p199, %p200
      %p202 = scmp.ne.s32.totalorder %s194, %s196
      %p203 = scmp.eq.s32.totalorder %s29, 1
      %p204 = por %p202, %p203
      %p205 = scmp.ne.s32.totalorder %s196, %s197
      %p206 = scmp.eq.s32.totalorder %s29, 0
      %p207 = por %p205, %p206
      %p208 = scmp.ne.s32.totalorder %s196, %s197
      %p209 = scmp.eq.s32.totalorder %s30, 1
      %p210 = por %p208, %p209
      %p212 = scmp.ne.s32.totalorder %s197, %s211
      %p213 = scmp.eq.s32.totalorder %s30, 0
      %p214 = por %p212, %p213
      %s216 = sadd.s32 %s215, 1
      %p219 = scmp.eq.s32.totalorder %s24, 1
      %p220 = scmp.ne.s32.totalorder %s215, %s217
      %p221 = scmp.eq.s32.totalorder %s24, 0
      %p222 = por %p220, %p221
      %p223 = scmp.ne.s32.totalorder %s215, %s217
      %p224 = scmp.eq.s32.totalorder %s29, 1
      %p225 = por %p223, %p224
      %p226 = scmp.ne.s32.totalorder %s217, %s218
      %p227 = scmp.eq.s32.totalorder %s29, 0
      %p228 = por %p226, %p227
      %p229 = scmp.ne.s32.totalorder %s217, %s218
      %p230 = scmp.eq.s32.totalorder %s30, 1
      %p231 = por %p229, %p230
      %p233 = scmp.ne.s32.totalorder %s218, %s232
      %p234 = scmp.eq.s32.totalorder %s30, 0
      %p235 = por %p233, %p234
      %s237 = sadd.s32 %s236, 1
      %p240 = scmp.eq.s32.totalorder %s24, 1
      %p241 = scmp.ne.s32.totalorder %s236, %s238
      %p242 = scmp.eq.s32.totalorder %s24, 0
      %p243 = por %p241, %p242
      %p244 = scmp.ne.s32.totalorder %s236, %s238
      %p245 = scmp.eq.s32.totalorder %s29, 1
      %p246 = por %p244, %p245
      %p247 = scmp.ne.s32.totalorder %s238, %s239
      %p248 = scmp.eq.s32.totalorder %s29, 0
      %p249 = por %p247, %p248
      %p250 = scmp.ne.s32.totalorder %s238, %s239
      %p251 = scmp.eq.s32.totalorder %s30, 1
      %p252 = por %p250, %p251
      %p254 = scmp.ne.s32.totalorder %s239, %s253
      %p255 = scmp.eq.s32.totalorder %s30, 0
      %p256 = por %p254, %p255
      %s258 = sadd.s32 %s257, 1
      %p261 = scmp.eq.s32.totalorder %s24, 1
      %p262 = scmp.ne.s32.totalorder %s257, %s259
      %p263 = scmp.eq.s32.totalorder %s24, 0
      %p264 = por %p262, %p263
      %p265 = scmp.ne.s32.totalorder %s257, %s259
      %p266 = scmp.eq.s32.totalorder %s29, 1
      %p267 = por %p265, %p266
      %p268 = scmp.ne.s32.totalorder %s259, %s260
      %p269 = scmp.eq.s32.totalorder %s29, 0
      %p270 = por %p268, %p269
      %p271 = scmp.ne.s32.totalorder %s259, %s260
      %p272 = scmp.eq.s32.totalorder %s30, 1
      %p273 = por %p271, %p272
      %p275 = scmp.ne.s32.totalorder %s260, %s274
      %p276 = scmp.eq.s32.totalorder %s30, 0
      %p277 = por %p275, %p276
      %s279 = sadd.s32 %s278, 1
      %p282 = scmp.eq.s32.totalorder %s24, 1
      %p283 = scmp.ne.s32.totalorder %s278, %s280
      %p284 = scmp.eq.s32.totalorder %s24, 0
      %p285 = por %p283, %p284
      %p286 = scmp.ne.s32.totalorder %s278, %s280
      %p287 = scmp.eq.s32.totalorder %s29, 1
      %p288 = por %p286, %p287
      %p289 = scmp.ne.s32.totalorder %s280, %s281
      %p290 = scmp.eq.s32.totalorder %s29, 0
      %p291 = por %p289, %p290
      %p292 = scmp.ne.s32.totalorder %s280, %s281
      %p293 = scmp.eq.s32.totalorder %s30, 1
      %p294 = por %p292, %p293
      %p296 = scmp.ne.s32.totalorder %s281, %s295
      %p297 = scmp.eq.s32.totalorder %s30, 0
      %p298 = por %p296, %p297
      %s300 = sadd.s32 %s299, 1
      %p303 = scmp.eq.s32.totalorder %s24, 1
      %p304 = scmp.ne.s32.totalorder %s299, %s301
      %p305 = scmp.eq.s32.totalorder %s24, 0
      %p306 = por %p304, %p305
      %p307 = scmp.ne.s32.totalorder %s299, %s301
      %p308 = scmp.eq.s32.totalorder %s29, 1
      %p309 = por %p307, %p308
      %p310 = scmp.ne.s32.totalorder %s301, %s302
      %p311 = scmp.eq.s32.totalorder %s29, 0
      %p312 = por %p310, %p311
      %p313 = scmp.ne.s32.totalorder %s301, %s302
      %p314 = scmp.eq.s32.totalorder %s30, 1
      %p315 = por %p313, %p314
      %p317 = scmp.ne.s32.totalorder %s302, %s316
      %p318 = scmp.eq.s32.totalorder %s30, 0
      %p319 = por %p317, %p318
      %s321 = sadd.s32 %s320, 1
      %p324 = scmp.eq.s32.totalorder %s24, 1
      %p325 = scmp.ne.s32.totalorder %s320, %s322
      %p326 = scmp.eq.s32.totalorder %s24, 0
      %p327 = por %p325, %p326
      %p328 = scmp.ne.s32.totalorder %s320, %s322
      %p329 = scmp.eq.s32.totalorder %s29, 1
      %p330 = por %p328, %p329
      %p331 = scmp.ne.s32.totalorder %s322, %s323
      %p332 = scmp.eq.s32.totalorder %s29, 0
      %p333 = por %p331, %p332
      %p334 = scmp.ne.s32.totalorder %s322, %s323
      %p335 = scmp.eq.s32.totalorder %s30, 1
      %p336 = por %p334, %p335
      %p338 = scmp.ne.s32.totalorder %s323, %s337
      %p339 = scmp.eq.s32.totalorder %s30, 0
      %p340 = por %p338, %p339
      %s342 = sadd.s32 %s341, 1
      %p345 = scmp.eq.s32.totalorder %s24, 1
      %p346 = scmp.ne.s32.totalorder %s341, %s343
      %p347 = scmp.eq.s32.totalorder %s24, 0
      %p348 = por %p346, %p347
      %p349 = scmp.ne.s32.totalorder %s341, %s343
      %p350 = scmp.eq.s32.totalorder %s29, 1
      %p351 = por %p349, %p350
      %p352 = scmp.ne.s32.totalorder %s343, %s344
      %p353 = scmp.eq.s32.totalorder %s29, 0
      %p354 = por %p352, %p353
      %p355 = scmp.ne.s32.totalorder %s343, %s344
      %p356 = scmp.eq.s32.totalorder %s30, 1
      %p357 = por %p355, %p356
      %p359 = scmp.ne.s32.totalorder %s344, %s358
      %p360 = scmp.eq.s32.totalorder %s30, 0
      %p361 = por %p359, %p360
      %s362 = ssub.s32 %s24, %s31
      %p363 = scmp.eq.s32.totalorder %s362, 0
      %s365 = sadd.s32 %s364, 1
      %s366 = scalar_select %p363, %s364, %s365
      %p369 = pneg %p363
      %p370 = scmp.eq.s32.totalorder %s24, 1
      %p371 = por %p369, %p370
      %p372 = scmp.ne.s32.totalorder %s364, %s367
      %p373 = scmp.eq.s32.totalorder %s24, 0
      %p374 = por %p372, %p373
      %p375 = scmp.ne.s32.totalorder %s364, %s367
      %p376 = scmp.eq.s32.totalorder %s29, 1
      %p377 = por %p375, %p376
      %p378 = scmp.ne.s32.totalorder %s367, %s368
      %p379 = scmp.eq.s32.totalorder %s29, 0
      %p380 = por %p378, %p379
      %p381 = scmp.ne.s32.totalorder %s367, %s368
      %p382 = scmp.eq.s32.totalorder %s30, 1
      %p383 = por %p381, %p382
      %p385 = scmp.ne.s32.totalorder %s368, %s384
      %p386 = scmp.eq.s32.totalorder %s30, 0
      %p387 = por %p385, %p386
      %p388 = scmp.le.s32.totalorder 1, %s24
      %p389 = scmp.lt.s32.totalorder %s24, 3
      %p390 = pnand %p388, %p389
      %p391 = pneg %p390
      // Predicated region
      $region9: #{tpu_custom_call.1} parent=5 // pred_check
        _
      $region10: #{tpu_custom_call.1} parent=5 // pred_check_branch
        %393 = sbr.rel (%p390) target = $region12
      $region11: #{tpu_custom_call.1} parent=5 // pred_region
        %s394 = ssub.s32 %s24, 1
        // Predicated region
        $region13: #{tpu_custom_call.1} parent=11 // pred_check
          %p395 = pneg %p123
        $region14: #{tpu_custom_call.1} parent=11 // pred_check_branch
          %397 = sbr.rel (%p395) target = $region16
        $region15: #{tpu_custom_call.1} parent=11 // pred_region
          _
        $region16: #{tpu_custom_call.1} parent=11 // pred_fallthru
          _
        // Predicated region
        $region17: #{tpu_custom_call.1} parent=11 // pred_check
          %p398 = pneg %p144
        $region18: #{tpu_custom_call.1} parent=11 // pred_check_branch
          %400 = sbr.rel (%p398) target = $region20
        $region19: #{tpu_custom_call.1} parent=11 // pred_region
          _
        $region20: #{tpu_custom_call.1} parent=11 // pred_fallthru
          _
        // Predicated region
        $region21: #{tpu_custom_call.1} parent=11 // pred_check
          %p401 = pneg %p165
        $region22: #{tpu_custom_call.1} parent=11 // pred_check_branch
          %403 = sbr.rel (%p401) target = $region24
        $region23: #{tpu_custom_call.1} parent=11 // pred_region
          _
        $region24: #{tpu_custom_call.1} parent=11 // pred_fallthru
          _
        // Predicated region
        $region25: #{tpu_custom_call.1} parent=11 // pred_check
          %p404 = pneg %p186
        $region26: #{tpu_custom_call.1} parent=11 // pred_check_branch
          %406 = sbr.rel (%p404) target = $region28
        $region27: #{tpu_custom_call.1} parent=11 // pred_region
          _
        $region28: #{tpu_custom_call.1} parent=11 // pred_fallthru
          _
        // Predicated region
        $region29: #{tpu_custom_call.1} parent=11 // pred_check
          %p407 = pneg %p207
        $region30: #{tpu_custom_call.1} parent=11 // pred_check_branch
          %409 = sbr.rel (%p407) target = $region32
        $region31: #{tpu_custom_call.1} parent=11 // pred_region
          _
        $region32: #{tpu_custom_call.1} parent=11 // pred_fallthru
          _
        // Predicated region
        $region33: #{tpu_custom_call.1} parent=11 // pred_check
          %p410 = pneg %p228
        $region34: #{tpu_custom_call.1} parent=11 // pred_check_branch
          %412 = sbr.rel (%p410) target = $region36
        $region35: #{tpu_custom_call.1} parent=11 // pred_region
          _
        $region36: #{tpu_custom_call.1} parent=11 // pred_fallthru
          _
        // Predicated region
        $region37: #{tpu_custom_call.1} parent=11 // pred_check
          %p413 = pneg %p249
        $region38: #{tpu_custom_call.1} parent=11 // pred_check_branch
          %415 = sbr.rel (%p413) target = $region40
        $region39: #{tpu_custom_call.1} parent=11 // pred_region
          _
        $region40: #{tpu_custom_call.1} parent=11 // pred_fallthru
          _
        // Predicated region
        $region41: #{tpu_custom_call.1} parent=11 // pred_check
          %p416 = pneg %p270
        $region42: #{tpu_custom_call.1} parent=11 // pred_check_branch
          %418 = sbr.rel (%p416) target = $region44
        $region43: #{tpu_custom_call.1} parent=11 // pred_region
          _
        $region44: #{tpu_custom_call.1} parent=11 // pred_fallthru
          _
        // Predicated region
        $region45: #{tpu_custom_call.1} parent=11 // pred_check
          %p419 = pneg %p291
        $region46: #{tpu_custom_call.1} parent=11 // pred_check_branch
          %421 = sbr.rel (%p419) target = $region48
        $region47: #{tpu_custom_call.1} parent=11 // pred_region
          _
        $region48: #{tpu_custom_call.1} parent=11 // pred_fallthru
          _
        // Predicated region
        $region49: #{tpu_custom_call.1} parent=11 // pred_check
          %p422 = pneg %p312
        $region50: #{tpu_custom_call.1} parent=11 // pred_check_branch
          %424 = sbr.rel (%p422) target = $region52
        $region51: #{tpu_custom_call.1} parent=11 // pred_region
          _
        $region52: #{tpu_custom_call.1} parent=11 // pred_fallthru
          _
        // Predicated region
        $region53: #{tpu_custom_call.1} parent=11 // pred_check
          %p425 = pneg %p333
        $region54: #{tpu_custom_call.1} parent=11 // pred_check_branch
          %427 = sbr.rel (%p425) target = $region56
        $region55: #{tpu_custom_call.1} parent=11 // pred_region
          _
        $region56: #{tpu_custom_call.1} parent=11 // pred_fallthru
          _
        // Predicated region
        $region57: #{tpu_custom_call.1} parent=11 // pred_check
          %p428 = pneg %p354
        $region58: #{tpu_custom_call.1} parent=11 // pred_check_branch
          %430 = sbr.rel (%p428) target = $region60
        $region59: #{tpu_custom_call.1} parent=11 // pred_region
          _
        $region60: #{tpu_custom_call.1} parent=11 // pred_fallthru
          _
      $region12: #{tpu_custom_call.1} parent=5 // pred_fallthru
        _
      %p431 = scmp.lt.s32.totalorder %s24, 2
      // Predicated region
      $region61: #{tpu_custom_call.1} parent=5 // pred_check
        %p432 = pneg %p431
      $region62: #{tpu_custom_call.1} parent=5 // pred_check_branch
        %434 = sbr.rel (%p432) target = $region64
      $region63: #{tpu_custom_call.1} parent=5 // pred_region
        // Predicated region
        $region65: #{tpu_custom_call.1} parent=63 // pred_check
          %p435 = pneg %p44
        $region66: #{tpu_custom_call.1} parent=63 // pred_check_branch
          %437 = sbr.rel (%p435) target = $region68
        $region67: #{tpu_custom_call.1} parent=63 // pred_region
          %p438 = scmp.lt.s32.totalorder %s24, 1
          %s439 = scalar_select %p438, %s24, 1
          %s440 = smul.addr %s439, 8
          %s441 = scalar_lea.vmem %s0, %s440
        $region68: #{tpu_custom_call.1} parent=63 // pred_fallthru
          _
        // Predicated region
        $region69: #{tpu_custom_call.1} parent=63 // pred_check
          %p442 = pneg %p70
        $region70: #{tpu_custom_call.1} parent=63 // pred_check_branch
          %444 = sbr.rel (%p442) target = $region72
        $region71: #{tpu_custom_call.1} parent=63 // pred_region
          %p445 = scmp.lt.s32.totalorder %s24, 1
          %s446 = scalar_select %p445, %s24, 1
          %s447 = scalar_lea.vmem %s1, %s446
        $region72: #{tpu_custom_call.1} parent=63 // pred_fallthru
          _
        // Predicated region
        $region73: #{tpu_custom_call.1} parent=63 // pred_check
          %p448 = pneg %p96
        $region74: #{tpu_custom_call.1} parent=63 // pred_check_branch
          %450 = sbr.rel (%p448) target = $region76
        $region75: #{tpu_custom_call.1} parent=63 // pred_region
          %p451 = scmp.lt.s32.totalorder %s24, 1
          %s452 = scalar_select %p451, %s24, 1
          %s453 = smul.addr %s452, 8
          %s454 = scalar_lea.vmem %s2, %s453
        $region76: #{tpu_custom_call.1} parent=63 // pred_fallthru
          _
      $region64: #{tpu_custom_call.1} parent=5 // pred_fallthru
        _
      %p455 = scmp.le.s32.totalorder 1, %s24
      %p456 = scmp.lt.s32.totalorder %s24, 3
      %p457 = pnand %p455, %p456
      %p458 = pneg %p457
      // Predicated region
      $region77: #{tpu_custom_call.1} parent=5 // pred_check
        _
      $region78: #{tpu_custom_call.1} parent=5 // pred_check_branch
        %460 = sbr.rel (%p457) target = $region80
      $region79: #{tpu_custom_call.1} parent=5 // pred_region
        %s461 = ssub.s32 %s24, 1
        %p462 = scmp.lt.s32.totalorder %s29, 1
        %s463 = scalar_select %p462, %s29, 1
        %s464 = smul.addr %s463, 8
        %s465 = scalar_lea.vmem %s0, %s464
        %p466 = pneg %p50
        %p467 = pneg %p47
        %p468 = scmp.lt.s32.totalorder %s29, 1
        %s469 = scalar_select %p468, %s29, 1
        %s470 = scalar_lea.vmem %s1, %s469
        %p471 = pneg %p76
        %p472 = pneg %p73
        %p473 = scmp.lt.s32.totalorder %s29, 1
        %s474 = scalar_select %p473, %s29, 1
        %s475 = smul.addr %s474, 8
        %s476 = scalar_lea.vmem %s2, %s475
        %p477 = pneg %p102
        %p478 = pneg %p99
        %p479 = pneg %p123
        %p480 = pneg %p120
        %p481 = pneg %p144
        %p482 = pneg %p141
        %p483 = pneg %p165
        %p484 = pneg %p162
        %p485 = pneg %p186
        %p486 = pneg %p183
        %p487 = pneg %p207
        %p488 = pneg %p204
        %p489 = pneg %p228
        %p490 = pneg %p225
        %p491 = pneg %p249
        %p492 = pneg %p246
        %p493 = pneg %p270
        %p494 = pneg %p267
        %p495 = pneg %p291
        %p496 = pneg %p288
        %p497 = pneg %p312
        %p498 = pneg %p309
        %p499 = pneg %p333
        %p500 = pneg %p330
        %p501 = pneg %p354
        %p502 = pneg %p351
        %p503 = pneg %p380
        %p504 = pneg %p377
        %s505 = sand.u32 %s367, 1
        %s506 = scalar_lea.sflag [#allocation3], %s505
        %s507 = sand.u32 %s367, 1
        %s508 = smul.addr %s507, 8
        %s509 = scalar_lea.vmem [#allocation2], %s508
        %p510 = scmp.lt.s32.totalorder %s29, 1
        %s511 = scalar_select %p510, %s29, 1
        %s512 = smul.addr %s511, 8
        %s513 = scalar_lea.vmem %s0, %s512
        %p514 = scmp.lt.s32.totalorder %s29, 1
        %s515 = scalar_select %p514, %s29, 1
        %s516 = scalar_lea.vmem %s1, %s515
        %p517 = scmp.lt.s32.totalorder %s29, 1
        %s518 = scalar_select %p517, %s29, 1
        %s519 = smul.addr %s518, 8
        %s520 = scalar_lea.vmem %s2, %s519
        %v522 = vld [vmem:[%s513] sm:$0xff]
        %v523 = vld [vmem:[%s520] sm:$0xff]
        %v524 = vld [vmem:[%s516] sm:$0x1]
        %526 = vset.pattern.permute.xlu0 0
        %527 = vperm.xlu0 %526, %v523
        %v528 = vpop.permute.xlu0 %527
        %v531 = vperm.slane %v524, 0
        %vm533 = vcmp.eq.f32.partialorder %v528, %v531
        %v534 = vsel %vm533, 0.0, -1e+30
        %v535 = vld [vmem:[%s3] sm:$0x1]
        %v536 = vld [vmem:[%s4] sm:$0x1]
        %vm537 = vcmask 261120
        %v538 = vsel %vm537, %v522, 0.0
        %539 = vadd.xlane.f32.xlu0 %v538
        %v540 = vpop.xlane.xlu0 %539
        %v541 = vrcp.pop 32.0
        %v542 = vmul.f32 32.0, %v541
        %v543 = vsub.f32 1.0, %v542
        %v544 = vmul.f32 %v541, %v543
        %v545 = vadd.f32 %v541, %v544
        %vm546 = vweird.f32 %v541
        %v547 = vsel %vm546, %v541, %v545
        %v548 = vmul.f32 %v540, %v547
        %v549 = vsub.f32 %v522, %v548
        %v550 = vmul.f32 %v549, %v549
        %v551 = vsel %vm537, %v550, 0.0
        %552 = vadd.xlane.f32.xlu0 %v551
        %v553 = vpop.xlane.xlu0 %552
        %v554 = vmul.f32 %v553, %v547
        %v555 = vadd.f32 %v554, 1e-05
        %v556 = vrsqrt.pop %v555
        %v557 = vmul.f32 %v556, %v555
        %v558 = vmul.f32 %v557, %v556
        %v559 = vmul.f32 0.5, %v558
        %v560 = vsub.f32 1.5, %v559
        %v561 = vmul.f32 %v556, %v560
        %vm562 = vweird.f32 %v555
        %vm563 = vweird.f32 %v556
        %vm564 = vmor %vm562, %vm563
        %v565 = vsel %vm564, %v556, %v561
        %v566 = vmul.f32 %v549, %v565
        %v568 = vperm.slane %v535, 0
        %v570 = vmul.f32 %v566, %v568
        %v572 = vperm.slane %v536, 0
        %v574 = vadd.f32 %v570, %v572
        %v575 = vpack.c.bf16 %v574, %v574
        %v576 = vld [vmem:[%s5] sm:$0xf]
        %v577 = vld [vmem:[%s5 + $0x4] sm:$0xf]
        %v578 = vld [vmem:[%s5 + $0x8] sm:$0xf]
        %v579 = vld [vmem:[%s5 + $0xc] sm:$0xf]
        %v584 = vunpack.c.l.b16 %v576
        %v585 = vunpack.c.l.b16 %v577
        %v586 = vunpack.c.l.b16 %v578
        %v587 = vunpack.c.l.b16 %v579
        %v588 = vpack.c.b16 %v585, %v584
        %v589 = vpack.c.b16 %v587, %v586
        %v593 = vsel %vm537, %v575, 0
        %595 = vmatpush.bf16.msra.mxu0 0
        %596 = vmatpush.bf16.msra.mxu0 0
        %597 = vmatpush.bf16.msra.mxu0 0
        %598 = vmatpush.bf16.msra.mxu0 0
        %599 = vmatpush.bf16.msra.mxu0 0
        %600 = vmatpush.bf16.msra.mxu0 0
        %601 = vmatpush.bf16.msra.mxu0 %v589
        %602 = vmatpush.bf16.msra.mxu0 %v588
        %603 = vmatmul.bf16.gmra.mxu0 %v593
        %v604 = vpop.f32.mrf.mxu0
        %v605 = vadd.f32 0.0, %v604
        %v606 = vpop.f32.mrf.mxu0
        %607 = vdwg.mxu0
        %v608 = vld [vmem:[%s6] sm:$0x1]
        %v609 = vsel %vm537, %v605, 0.0
        %610 = vadd.xlane.f32.xlu0 %v609
        %v611 = vpop.xlane.xlu0 %610
        %v612 = vmul.f32 %v611, %v547
        %v613 = vsub.f32 %v605, %v612
        %v614 = vmul.f32 %v613, %v613
        %v615 = vsel %vm537, %v614, 0.0
        %616 = vadd.xlane.f32.xlu0 %v615
        %v617 = vpop.xlane.xlu0 %616
        %v618 = vmul.f32 %v617, %v547
        %v619 = vadd.f32 %v618, 1e-05
        %v620 = vrsqrt.pop %v619
        %v621 = vmul.f32 %v620, %v619
        %v622 = vmul.f32 %v621, %v620
        %v623 = vmul.f32 0.5, %v622
        %v624 = vsub.f32 1.5, %v623
        %v625 = vmul.f32 %v620, %v624
        %vm626 = vweird.f32 %v619
        %vm627 = vweird.f32 %v620
        %vm628 = vmor %vm626, %vm627
        %v629 = vsel %vm628, %v620, %v625
        %v630 = vmul.f32 %v613, %v629
        %v632 = vperm.slane %v608, 0
        %v634 = vmul.f32 %v630, %v632
        %v635 = vadd.f32 %v634, 0.0
        %v636 = vld [vmem:[%s7] sm:$0x1]
        %638 = vrot.lane.b32.xlu0 %v605, 96
        %v639 = vpop.permute.xlu0 %638
        %v641 = vsel %vm537, %v639, 0.0
        %642 = vadd.xlane.f32.xlu0 %v641
        %v643 = vpop.xlane.xlu0 %642
        %v644 = vmul.f32 %v643, %v547
        %v645 = vsub.f32 %v605, %v644
        %v646 = vmul.f32 %v645, %v645
        %648 = vrot.lane.b32.xlu0 %v646, 96
        %v649 = vpop.permute.xlu0 %648
        %v651 = vsel %vm537, %v649, 0.0
        %652 = vadd.xlane.f32.xlu0 %v651
        %v653 = vpop.xlane.xlu0 %652
        %v654 = vmul.f32 %v653, %v547
        %v655 = vadd.f32 %v654, 1e-05
        %v656 = vrsqrt.pop %v655
        %v657 = vmul.f32 %v656, %v655
        %v658 = vmul.f32 %v657, %v656
        %v659 = vmul.f32 0.5, %v658
        %v660 = vsub.f32 1.5, %v659
        %v661 = vmul.f32 %v656, %v660
        %vm662 = vweird.f32 %v655
        %vm663 = vweird.f32 %v656
        %vm664 = vmor %vm662, %vm663
        %v665 = vsel %vm664, %v656, %v661
        %v666 = vmul.f32 %v645, %v665
        %v668 = vperm.slane %v636, 0
        %669 = vrot.lane.b32.xlu0 %v668, 32
        %v670 = vpop.permute.xlu0 %669
        %v672 = vmul.f32 %v666, %v670
        %v673 = vadd.f32 %v672, 0.0
        %v674 = vld [vmem:[%s8] sm:$0xff]
        %v675 = vld [vmem:[%s9] sm:$0xff]
        %677 = vrot.lane.b32.xlu0 %v635, 112
        %v678 = vpop.permute.xlu0 %677
        %v680 = vrot.slane %v635, 4
        %vm681 = vcmask 1047556
        %v682 = vsel %vm681, 0.0, %v680
        %v684 = vunpack.c.l.s4 1983009808
        %v685 = vunpack.c.0.s8 %v684
        %v686 = vperm.slane %v635, %v685
        %v688 = vunpack.c.l.s4 1983009808
        %v689 = vunpack.c.0.s8 %v688
        %v690 = vperm.slane %v682, %v689
        %v691 = vrot.slane %v678, 4
        %v692 = vsel %vm681, 0.0, %v691
        %v694 = vunpack.c.l.s4 1983009808
        %v695 = vunpack.c.0.s8 %v694
        %v696 = vperm.slane %v678, %v695
        %v698 = vunpack.c.l.s4 1983009808
        %v699 = vunpack.c.0.s8 %v698
        %v700 = vperm.slane %v692, %v699
        %v701 = vrot.slane %v696, 4
        %v702 = vsel %vm681, %v701, %v686
        %v703 = vrot.slane %v686, 4
        %v704 = vsel %vm681, %v696, %v703
        %v706 = vunpack.c.l.s4 1934713408
        %v707 = vunpack.c.0.s8 %v706
        %v708 = vperm.slane %v702, %v707
        %v710 = vunpack.c.l.s4 1934713408
        %v711 = vunpack.c.0.s8 %v710
        %v712 = vperm.slane %v704, %v711
        %v713 = vrot.slane %v700, 4
        %v714 = vsel %vm681, %v713, %v690
        %v715 = vrot.slane %v690, 4
        %v716 = vsel %vm681, %v700, %v715
        %v718 = vunpack.c.l.s4 1934713408
        %v719 = vunpack.c.0.s8 %v718
        %v720 = vperm.slane %v714, %v719
        %v722 = vunpack.c.l.s4 1934713408
        %v723 = vunpack.c.0.s8 %v722
        %v724 = vperm.slane %v716, %v723
        %v725 = vrot.slane %v708, 4
        %v726 = vsel %vm681, 0.0, %v725
        %v727 = vrot.slane %v712, 4
        %v728 = vsel %vm681, 0.0, %v727
        %v729 = vrot.slane %v720, 4
        %v730 = vsel %vm681, 0.0, %v729
        %v731 = vrot.slane %v724, 4
        %v732 = vsel %vm681, 0.0, %v731
        %v733 = vsel %vm681, %v727, %v708
        %v735 = vunpack.c.l.s4 1983009808
        %v736 = vunpack.c.0.s8 %v735
        %v737 = vperm.slane %v733, %v736
        %v738 = vrot.slane %v728, 4
        %v739 = vsel %vm681, %v738, %v726
        %v741 = vunpack.c.l.s4 1983009808
        %v742 = vunpack.c.0.s8 %v741
        %v743 = vperm.slane %v739, %v742
        %v744 = vsel %vm681, %v731, %v720
        %v746 = vunpack.c.l.s4 1983009808
        %v747 = vunpack.c.0.s8 %v746
        %v748 = vperm.slane %v744, %v747
        %v749 = vrot.slane %v732, 4
        %v750 = vsel %vm681, %v749, %v730
        %v752 = vunpack.c.l.s4 1983009808
        %v753 = vunpack.c.0.s8 %v752
        %v754 = vperm.slane %v750, %v753
        %v755 = vrot.slane %v743, 4
        %v756 = vsel %vm681, %v755, %v737
        %v758 = vunpack.c.l.s4 1934713408
        %v759 = vunpack.c.0.s8 %v758
        %v760 = vperm.slane %v756, %v759
        %v761 = vrot.slane %v754, 4
        %v762 = vsel %vm681, %v761, %v748
        %v764 = vunpack.c.l.s4 1934713408
        %v765 = vunpack.c.0.s8 %v764
        %v766 = vperm.slane %v762, %v765
        %v767 = vrot.slane %v766, 4
        %v768 = vsel %vm681, %v767, %v760
        %v769 = vrot.slane %v760, 4
        %v770 = vsel %vm681, %v766, %v769
        %v771 = vsub.f32 0.0, %v768
        %v772 = vsub.f32 0.0, %v770
        %775 = vrot.lane.b32.xlu0 %v771, 120
        %v776 = vpop.permute.xlu0 %775
        %777 = vrot.lane.b32.xlu0 %v772, 120
        %v778 = vpop.permute.xlu0 %777
        %783 = vrot.lane.b32.xlu0 %v768, 8
        %v784 = vpop.permute.xlu0 %783
        %785 = vrot.lane.b32.xlu0 %v770, 8
        %v786 = vpop.permute.xlu0 %785
        %vm789 = vcmask 64512
        %v790 = vsel %vm789, %v776, %v784
        %v791 = vsel %vm789, %v778, %v786
        %v792 = vmul.f32 %v768, %v674
        %v793 = vmul.f32 %v770, %v674
        %v794 = vmul.f32 %v790, %v675
        %v795 = vmul.f32 %v791, %v675
        %v796 = vadd.f32 %v792, %v794
        %v797 = vadd.f32 %v793, %v795
        %v798 = vmul.f32 %v796, 0.25
        %v799 = vmul.f32 %v797, 0.25
        %801 = vrot.lane.b32.xlu0 %v673, 112
        %v802 = vpop.permute.xlu0 %801
        %803 = vrot.lane.b32.xlu0 %v673, 96
        %v804 = vpop.permute.xlu0 %803
        %805 = vrot.lane.b32.xlu0 %v802, 96
        %v806 = vpop.permute.xlu0 %805
        %v809 = vrot.slane %v804, 4
        %v810 = vsel %vm681, 0.0, %v809
        %v812 = vunpack.c.l.s4 1983009808
        %v813 = vunpack.c.0.s8 %v812
        %v814 = vperm.slane %v804, %v813
        %v816 = vunpack.c.l.s4 1983009808
        %v817 = vunpack.c.0.s8 %v816
        %v818 = vperm.slane %v810, %v817
        %v819 = vrot.slane %v806, 4
        %v820 = vsel %vm681, 0.0, %v819
        %v822 = vunpack.c.l.s4 1983009808
        %v823 = vunpack.c.0.s8 %v822
        %v824 = vperm.slane %v806, %v823
        %v826 = vunpack.c.l.s4 1983009808
        %v827 = vunpack.c.0.s8 %v826
        %v828 = vperm.slane %v820, %v827
        %v829 = vrot.slane %v824, 4
        %v830 = vsel %vm681, %v829, %v814
        %v831 = vrot.slane %v814, 4
        %v832 = vsel %vm681, %v824, %v831
        %v834 = vunpack.c.l.s4 1934713408
        %v835 = vunpack.c.0.s8 %v834
        %v836 = vperm.slane %v830, %v835
        %v838 = vunpack.c.l.s4 1934713408
        %v839 = vunpack.c.0.s8 %v838
        %v840 = vperm.slane %v832, %v839
        %v841 = vrot.slane %v828, 4
        %v842 = vsel %vm681, %v841, %v818
        %v843 = vrot.slane %v818, 4
        %v844 = vsel %vm681, %v828, %v843
        %v846 = vunpack.c.l.s4 1934713408
        %v847 = vunpack.c.0.s8 %v846
        %v848 = vperm.slane %v842, %v847
        %v850 = vunpack.c.l.s4 1934713408
        %v851 = vunpack.c.0.s8 %v850
        %v852 = vperm.slane %v844, %v851
        %v853 = vrot.slane %v836, 4
        %v854 = vsel %vm681, 0.0, %v853
        %v855 = vrot.slane %v840, 4
        %v856 = vsel %vm681, 0.0, %v855
        %v857 = vrot.slane %v848, 4
        %v858 = vsel %vm681, 0.0, %v857
        %v859 = vrot.slane %v852, 4
        %v860 = vsel %vm681, 0.0, %v859
        %v861 = vsel %vm681, %v855, %v836
        %v863 = vunpack.c.l.s4 1983009808
        %v864 = vunpack.c.0.s8 %v863
        %v865 = vperm.slane %v861, %v864
        %v866 = vrot.slane %v856, 4
        %v867 = vsel %vm681, %v866, %v854
        %v869 = vunpack.c.l.s4 1983009808
        %v870 = vunpack.c.0.s8 %v869
        %v871 = vperm.slane %v867, %v870
        %v872 = vsel %vm681, %v859, %v848
        %v874 = vunpack.c.l.s4 1983009808
        %v875 = vunpack.c.0.s8 %v874
        %v876 = vperm.slane %v872, %v875
        %v877 = vrot.slane %v860, 4
        %v878 = vsel %vm681, %v877, %v858
        %v880 = vunpack.c.l.s4 1983009808
        %v881 = vunpack.c.0.s8 %v880
        %v882 = vperm.slane %v878, %v881
        %v883 = vrot.slane %v871, 4
        %v884 = vsel %vm681, %v883, %v865
        %v886 = vunpack.c.l.s4 1934713408
        %v887 = vunpack.c.0.s8 %v886
        %v888 = vperm.slane %v884, %v887
        %v889 = vrot.slane %v882, 4
        %v890 = vsel %vm681, %v889, %v876
        %v892 = vunpack.c.l.s4 1934713408
        %v893 = vunpack.c.0.s8 %v892
        %v894 = vperm.slane %v890, %v893
        %v895 = vrot.slane %v894, 4
        %v896 = vsel %vm681, %v895, %v888
        %v897 = vrot.slane %v888, 4
        %v898 = vsel %vm681, %v894, %v897
        %v899 = vsub.f32 0.0, %v896
        %v900 = vsub.f32 0.0, %v898
        %903 = vrot.lane.b32.xlu0 %v899, 120
        %v904 = vpop.permute.xlu0 %903
        %905 = vrot.lane.b32.xlu0 %v900, 120
        %v906 = vpop.permute.xlu0 %905
        %911 = vrot.lane.b32.xlu0 %v896, 8
        %v912 = vpop.permute.xlu0 %911
        %913 = vrot.lane.b32.xlu0 %v898, 8
        %v914 = vpop.permute.xlu0 %913
        %v917 = vsel %vm789, %v904, %v912
        %v918 = vsel %vm789, %v906, %v914
        %v919 = vmul.f32 %v896, %v674
        %v920 = vmul.f32 %v898, %v674
        %v921 = vmul.f32 %v917, %v675
        %v922 = vmul.f32 %v918, %v675
        %v923 = vadd.f32 %v919, %v921
        %v924 = vadd.f32 %v920, %v922
        %925 = vrot.lane.b32.xlu0 %v605, 112
        %v926 = vpop.permute.xlu0 %925
        %927 = vrot.lane.b32.xlu0 %v605, 64
        %v928 = vpop.permute.xlu0 %927
        %929 = vrot.lane.b32.xlu0 %v926, 64
        %v930 = vpop.permute.xlu0 %929
        %v933 = vrot.slane %v928, 4
        %v934 = vsel %vm681, 0.0, %v933
        %v936 = vunpack.c.l.s4 1983009808
        %v937 = vunpack.c.0.s8 %v936
        %v938 = vperm.slane %v928, %v937
        %v940 = vunpack.c.l.s4 1983009808
        %v941 = vunpack.c.0.s8 %v940
        %v942 = vperm.slane %v934, %v941
        %v943 = vrot.slane %v930, 4
        %v944 = vsel %vm681, 0.0, %v943
        %v946 = vunpack.c.l.s4 1983009808
        %v947 = vunpack.c.0.s8 %v946
        %v948 = vperm.slane %v930, %v947
        %v950 = vunpack.c.l.s4 1983009808
        %v951 = vunpack.c.0.s8 %v950
        %v952 = vperm.slane %v944, %v951
        %v953 = vrot.slane %v948, 4
        %v954 = vsel %vm681, %v953, %v938
        %v955 = vrot.slane %v938, 4
        %v956 = vsel %vm681, %v948, %v955
        %v958 = vunpack.c.l.s4 1934713408
        %v959 = vunpack.c.0.s8 %v958
        %v960 = vperm.slane %v954, %v959
        %v962 = vunpack.c.l.s4 1934713408
        %v963 = vunpack.c.0.s8 %v962
        %v964 = vperm.slane %v956, %v963
        %v965 = vrot.slane %v952, 4
        %v966 = vsel %vm681, %v965, %v942
        %v967 = vrot.slane %v942, 4
        %v968 = vsel %vm681, %v952, %v967
        %v970 = vunpack.c.l.s4 1934713408
        %v971 = vunpack.c.0.s8 %v970
        %v972 = vperm.slane %v966, %v971
        %v974 = vunpack.c.l.s4 1934713408
        %v975 = vunpack.c.0.s8 %v974
        %v976 = vperm.slane %v968, %v975
        %v977 = vrot.slane %v960, 4
        %v978 = vsel %vm681, 0.0, %v977
        %v979 = vrot.slane %v964, 4
        %v980 = vsel %vm681, 0.0, %v979
        %v981 = vrot.slane %v972, 4
        %v982 = vsel %vm681, 0.0, %v981
        %v983 = vrot.slane %v976, 4
        %v984 = vsel %vm681, 0.0, %v983
        %v985 = vsel %vm681, %v979, %v960
        %v987 = vunpack.c.l.s4 1983009808
        %v988 = vunpack.c.0.s8 %v987
        %v989 = vperm.slane %v985, %v988
        %v990 = vrot.slane %v980, 4
        %v991 = vsel %vm681, %v990, %v978
        %v993 = vunpack.c.l.s4 1983009808
        %v994 = vunpack.c.0.s8 %v993
        %v995 = vperm.slane %v991, %v994
        %v996 = vsel %vm681, %v983, %v972
        %v998 = vunpack.c.l.s4 1983009808
        %v999 = vunpack.c.0.s8 %v998
        %v1000 = vperm.slane %v996, %v999
        %v1001 = vrot.slane %v984, 4
        %v1002 = vsel %vm681, %v1001, %v982
        %v1004 = vunpack.c.l.s4 1983009808
        %v1005 = vunpack.c.0.s8 %v1004
        %v1006 = vperm.slane %v1002, %v1005
        %v1007 = vrot.slane %v995, 4
        %v1008 = vsel %vm681, %v1007, %v989
        %v1010 = vunpack.c.l.s4 1934713408
        %v1011 = vunpack.c.0.s8 %v1010
        %v1012 = vperm.slane %v1008, %v1011
        %v1013 = vrot.slane %v1006, 4
        %v1014 = vsel %vm681, %v1013, %v1000
        %v1016 = vunpack.c.l.s4 1934713408
        %v1017 = vunpack.c.0.s8 %v1016
        %v1018 = vperm.slane %v1014, %v1017
        %v1019 = vrot.slane %v1018, 4
        %v1020 = vsel %vm681, %v1019, %v1012
        %v1021 = vrot.slane %v1012, 4
        %v1022 = vsel %vm681, %v1018, %v1021
        %v1023 = vpack.c.bf16 %v798, %v798
        %v1024 = vpack.c.bf16 %v799, %v799
        %v1025 = vpack.c.bf16 %v923, %v923
        %v1026 = vpack.c.bf16 %v924, %v924
        %vm1027 = vcmask 130048
        %v1029 = vsel %vm1027, %v1023, 0
        %v1032 = vsel %vm1027, %v1025, 0
        %1034 = vmatpush.bf16.xpose.msra.mxu0 0
        %1035 = vmatpush.bf16.xpose.msra.mxu0 0
        %1036 = vmatpush.bf16.xpose.msra.mxu0 0
        %1037 = vmatpush.bf16.xpose.msra.mxu0 0
        %1038 = vmatpush.bf16.xpose.msra.mxu0 0
        %1039 = vmatpush.bf16.xpose.msra.mxu0 0
        %1040 = vmatpush.bf16.xpose.msra.mxu0 0
        %1041 = vmatpush.bf16.xpose.msra.mxu0 %v1032
        %1042 = vmatmul.bf16.gmra.mxu0 %v1029
        %v1043 = vpop.f32.mrf.mxu0
        %v1044 = vadd.f32 %v534, %v1043
        %v1045 = vpop.f32.mrf.mxu0
        %1046 = vdwg.mxu0
        %v1048 = vsel %vm1027, %v1024, 0
        %v1051 = vsel %vm1027, %v1026, 0
        %1053 = vmatpush.bf16.xpose.msra.mxu0 0
        %1054 = vmatpush.bf16.xpose.msra.mxu0 0
        %1055 = vmatpush.bf16.xpose.msra.mxu0 0
        %1056 = vmatpush.bf16.xpose.msra.mxu0 0
        %1057 = vmatpush.bf16.xpose.msra.mxu0 0
        %1058 = vmatpush.bf16.xpose.msra.mxu0 0
        %1059 = vmatpush.bf16.xpose.msra.mxu0 0
        %1060 = vmatpush.bf16.xpose.msra.mxu0 %v1051
        %1061 = vmatmul.bf16.gmra.mxu0 %v1048
        %v1062 = vpop.f32.mrf.mxu0
        %v1063 = vadd.f32 %v534, %v1062
        %v1064 = vpop.f32.mrf.mxu0
        %1065 = vdwg.mxu0
        %v1066 = vsel %vm789, %v1044, -inf
        %1067 = vmax.xlane.f32.xlu0 %v1066
        %v1068 = vpop.xlane.xlu0 %1067
        %v1069 = vsel %vm789, %v1063, -inf
        %1070 = vmax.xlane.f32.xlu0 %v1069
        %v1071 = vpop.xlane.xlu0 %1070
        %v1072 = vsub.f32 %v1044, %v1068
        %v1073 = vsub.f32 %v1063, %v1071
        %v1074 = vmul.f32 %v1072, 1.442695
        %v1075 = vpow.pop %v1074
        %v1076 = vmul.f32 %v1073, 1.442695
        %v1077 = vpow.pop %v1076
        %v1078 = vsel %vm789, %v1075, 0.0
        %1079 = vadd.xlane.f32.xlu0 %v1078
        %v1080 = vpop.xlane.xlu0 %1079
        %v1081 = vsel %vm789, %v1077, 0.0
        %1082 = vadd.xlane.f32.xlu0 %v1081
        %v1083 = vpop.xlane.xlu0 %1082
        %v1084 = vrcp.pop %v1080
        %v1085 = vrcp.pop %v1083
        %v1086 = vmul.f32 %v1075, %v1084
        %v1087 = vmul.f32 %v1077, %v1085
        %v1088 = vpack.c.bf16 %v1086, %v1086
        %v1089 = vpack.c.bf16 %v1087, %v1087
        %v1090 = vpack.c.bf16 %v1020, %v1020
        %v1091 = vpack.c.bf16 %v1022, %v1022
        %v1093 = vsel %vm789, %v1088, 0
        %vm1095 = vcmask 1043456
        %v1097 = vsel %vm1095, %v1090, 0
        %1099 = vmatpush.bf16.msra.mxu0 0
        %1100 = vmatpush.bf16.msra.mxu0 0
        %1101 = vmatpush.bf16.msra.mxu0 0
        %1102 = vmatpush.bf16.msra.mxu0 0
        %1103 = vmatpush.bf16.msra.mxu0 0
        %1104 = vmatpush.bf16.msra.mxu0 0
        %1105 = vmatpush.bf16.msra.mxu0 0
        %1106 = vmatpush.bf16.msra.mxu0 %v1097
        %1107 = vmatmul.bf16.gmra.mxu0 %v1093
        %v1108 = vpop.f32.mrf.mxu0
        %v1109 = vadd.f32 0.0, %v1108
        %v1110 = vpop.f32.mrf.mxu0
        %1111 = vdwg.mxu0
        %v1113 = vsel %vm789, %v1089, 0
        %v1116 = vsel %vm1095, %v1091, 0
        %1118 = vmatpush.bf16.msra.mxu0 0
        %1119 = vmatpush.bf16.msra.mxu0 0
        %1120 = vmatpush.bf16.msra.mxu0 0
        %1121 = vmatpush.bf16.msra.mxu0 0
        %1122 = vmatpush.bf16.msra.mxu0 0
        %1123 = vmatpush.bf16.msra.mxu0 0
        %1124 = vmatpush.bf16.msra.mxu0 0
        %1125 = vmatpush.bf16.msra.mxu0 %v1116
        %1126 = vmatmul.bf16.gmra.mxu0 %v1113
        %v1127 = vpop.f32.mrf.mxu0
        %v1128 = vadd.f32 0.0, %v1127
        %v1129 = vpop.f32.mrf.mxu0
        %1130 = vdwg.mxu0
        %v1131 = vrot.slane %v1109, 4
        %v1132 = vsel %vm681, 0.0, %v1131
        %v1134 = vunpack.c.l.s4 1983009808
        %v1135 = vunpack.c.0.s8 %v1134
        %v1136 = vperm.slane %v1109, %v1135
        %v1138 = vunpack.c.l.s4 1983009808
        %v1139 = vunpack.c.0.s8 %v1138
        %v1140 = vperm.slane %v1132, %v1139
        %v1141 = vrot.slane %v1128, 4
        %v1142 = vsel %vm681, 0.0, %v1141
        %v1144 = vunpack.c.l.s4 1983009808
        %v1145 = vunpack.c.0.s8 %v1144
        %v1146 = vperm.slane %v1128, %v1145
        %v1148 = vunpack.c.l.s4 1983009808
        %v1149 = vunpack.c.0.s8 %v1148
        %v1150 = vperm.slane %v1142, %v1149
        %v1151 = vrot.slane %v1146, 4
        %v1152 = vsel %vm681, %v1151, %v1136
        %v1153 = vrot.slane %v1136, 4
        %v1154 = vsel %vm681, %v1146, %v1153
        %v1156 = vunpack.c.l.s4 1934713408
        %v1157 = vunpack.c.0.s8 %v1156
        %v1158 = vperm.slane %v1152, %v1157
        %v1160 = vunpack.c.l.s4 1934713408
        %v1161 = vunpack.c.0.s8 %v1160
        %v1162 = vperm.slane %v1154, %v1161
        %v1163 = vrot.slane %v1150, 4
        %v1164 = vsel %vm681, %v1163, %v1140
        %v1165 = vrot.slane %v1140, 4
        %v1166 = vsel %vm681, %v1150, %v1165
        %v1168 = vunpack.c.l.s4 1934713408
        %v1169 = vunpack.c.0.s8 %v1168
        %v1170 = vperm.slane %v1164, %v1169
        %v1172 = vunpack.c.l.s4 1934713408
        %v1173 = vunpack.c.0.s8 %v1172
        %v1174 = vperm.slane %v1166, %v1173
        %v1175 = vrot.slane %v1158, 4
        %v1176 = vsel %vm681, 0.0, %v1175
        %v1177 = vrot.slane %v1162, 4
        %v1178 = vsel %vm681, 0.0, %v1177
        %v1179 = vrot.slane %v1170, 4
        %v1180 = vsel %vm681, 0.0, %v1179
        %v1181 = vrot.slane %v1174, 4
        %v1182 = vsel %vm681, 0.0, %v1181
        %v1183 = vsel %vm681, %v1177, %v1158
        %v1185 = vunpack.c.l.s4 1983009808
        %v1186 = vunpack.c.0.s8 %v1185
        %v1187 = vperm.slane %v1183, %v1186
        %v1188 = vrot.slane %v1178, 4
        %v1189 = vsel %vm681, %v1188, %v1176
        %v1191 = vunpack.c.l.s4 1983009808
        %v1192 = vunpack.c.0.s8 %v1191
        %v1193 = vperm.slane %v1189, %v1192
        %v1194 = vsel %vm681, %v1181, %v1170
        %v1196 = vunpack.c.l.s4 1983009808
        %v1197 = vunpack.c.0.s8 %v1196
        %v1198 = vperm.slane %v1194, %v1197
        %v1199 = vrot.slane %v1182, 4
        %v1200 = vsel %vm681, %v1199, %v1180
        %v1202 = vunpack.c.l.s4 1983009808
        %v1203 = vunpack.c.0.s8 %v1202
        %v1204 = vperm.slane %v1200, %v1203
        %v1205 = vrot.slane %v1193, 4
        %v1206 = vsel %vm681, %v1205, %v1187
        %v1208 = vunpack.c.l.s4 1934713408
        %v1209 = vunpack.c.0.s8 %v1208
        %v1210 = vperm.slane %v1206, %v1209
        %v1211 = vrot.slane %v1204, 4
        %v1212 = vsel %vm681, %v1211, %v1198
        %v1214 = vunpack.c.l.s4 1934713408
        %v1215 = vunpack.c.0.s8 %v1214
        %v1216 = vperm.slane %v1212, %v1215
        %v1217 = vrot.slane %v1216, 4
        %v1218 = vsel %vm681, %v1217, %v1210
        %v1219 = vrot.slane %v1210, 4
        %v1220 = vsel %vm681, %v1216, %v1219
        %1222 = vrot.lane.b32.xlu0 %v1220, 16
        %v1223 = vpop.permute.xlu0 %1222
        %v1225 = vsel %vm1027, %v1218, %v1223
        %v1226 = vpack.c.bf16 %v1225, %v1225
        %v1227 = vld [vmem:[%s10] sm:$0xf]
        %v1228 = vld [vmem:[%s10 + $0x4] sm:$0xf]
        %v1229 = vld [vmem:[%s10 + $0x8] sm:$0xf]
        %v1230 = vld [vmem:[%s10 + $0xc] sm:$0xf]
        %v1235 = vunpack.c.l.b16 %v1227
        %v1236 = vunpack.c.l.b16 %v1228
        %v1237 = vunpack.c.l.b16 %v1229
        %v1238 = vunpack.c.l.b16 %v1230
        %v1239 = vpack.c.b16 %v1236, %v1235
        %v1240 = vpack.c.b16 %v1238, %v1237
        %v1244 = vsel %vm537, %v1226, 0
        %1246 = vmatpush.bf16.msra.mxu0 0
        %1247 = vmatpush.bf16.msra.mxu0 0
        %1248 = vmatpush.bf16.msra.mxu0 0
        %1249 = vmatpush.bf16.msra.mxu0 0
        %1250 = vmatpush.bf16.msra.mxu0 0
        %1251 = vmatpush.bf16.msra.mxu0 0
        %1252 = vmatpush.bf16.msra.mxu0 %v1240
        %1253 = vmatpush.bf16.msra.mxu0 %v1239
        %1254 = vmatmul.bf16.gmra.mxu0 %v1244
        %v1255 = vpop.f32.mrf.mxu0
        %v1256 = vadd.f32 0.0, %v1255
        %v1257 = vpop.f32.mrf.mxu0
        %1258 = vdwg.mxu0
        %v1259 = vmul.f32 %v1256, 4.2426405
        %v1260 = vadd.f32 %v522, %v1259
        %v1261 = vld [vmem:[%s11] sm:$0x1]
        %v1262 = vld [vmem:[%s12] sm:$0x1]
        %v1263 = vsel %vm537, %v1260, 0.0
        %1264 = vadd.xlane.f32.xlu0 %v1263
        %v1265 = vpop.xlane.xlu0 %1264
        %v1266 = vmul.f32 %v1265, %v547
        %v1267 = vsub.f32 %v1260, %v1266
        %v1268 = vmul.f32 %v1267, %v1267
        %v1269 = vsel %vm537, %v1268, 0.0
        %1270 = vadd.xlane.f32.xlu0 %v1269
        %v1271 = vpop.xlane.xlu0 %1270
        %v1272 = vmul.f32 %v1271, %v547
        %v1273 = vadd.f32 %v1272, 1e-05
        %v1274 = vrsqrt.pop %v1273
        %v1275 = vmul.f32 %v1274, %v1273
        %v1276 = vmul.f32 %v1275, %v1274
        %v1277 = vmul.f32 0.5, %v1276
        %v1278 = vsub.f32 1.5, %v1277
        %v1279 = vmul.f32 %v1274, %v1278
        %vm1280 = vweird.f32 %v1273
        %vm1281 = vweird.f32 %v1274
        %vm1282 = vmor %vm1280, %vm1281
        %v1283 = vsel %vm1282, %v1274, %v1279
        %v1284 = vmul.f32 %v1267, %v1283
        %v1286 = vperm.slane %v1261, 0
        %v1288 = vmul.f32 %v1284, %v1286
        %v1290 = vperm.slane %v1262, 0
        %v1292 = vadd.f32 %v1288, %v1290
        %v1293 = vpack.c.bf16 %v1292, %v1292
        %v1294 = vld [vmem:[%s13] sm:$0xff]
        %v1295 = vld [vmem:[%s13 + $0x8] sm:$0xff]
        %v1296 = vld [vmem:[%s13 + $0x10] sm:$0xff]
        %v1297 = vld [vmem:[%s13 + $0x18] sm:$0xff]
        %v1298 = vld [vmem:[%s13 + $0x20] sm:$0xff]
        %v1299 = vld [vmem:[%s13 + $0x28] sm:$0xff]
        %v1300 = vld [vmem:[%s13 + $0x30] sm:$0xff]
        %v1301 = vld [vmem:[%s13 + $0x38] sm:$0xff]
        %v1310 = vunpack.c.l.b16 %v1294
        %v1311 = vunpack.c.h.b16 %v1294
        %v1312 = vunpack.c.l.b16 %v1295
        %v1313 = vunpack.c.h.b16 %v1295
        %v1314 = vunpack.c.l.b16 %v1296
        %v1315 = vunpack.c.h.b16 %v1296
        %v1316 = vunpack.c.l.b16 %v1297
        %v1317 = vunpack.c.h.b16 %v1297
        %v1318 = vunpack.c.l.b16 %v1298
        %v1319 = vunpack.c.h.b16 %v1298
        %v1320 = vunpack.c.l.b16 %v1299
        %v1321 = vunpack.c.h.b16 %v1299
        %v1322 = vunpack.c.l.b16 %v1300
        %v1323 = vunpack.c.h.b16 %v1300
        %v1324 = vunpack.c.l.b16 %v1301
        %v1325 = vunpack.c.h.b16 %v1301
        %v1326 = vpack.c.b16 %v1314, %v1310
        %v1327 = vpack.c.b16 %v1315, %v1311
        %v1328 = vpack.c.b16 %v1316, %v1312
        %v1329 = vpack.c.b16 %v1317, %v1313
        %v1330 = vpack.c.b16 %v1322, %v1318
        %v1331 = vpack.c.b16 %v1323, %v1319
        %v1332 = vpack.c.b16 %v1324, %v1320
        %v1333 = vpack.c.b16 %v1325, %v1321
        %v1343 = vsel %vm537, %v1293, 0
        %1345 = vmatpush.bf16.msra.mxu0 0
        %1346 = vmatpush.bf16.msra.mxu0 0
        %1347 = vmatpush.bf16.msra.mxu0 0
        %1348 = vmatpush.bf16.msra.mxu0 0
        %1349 = vmatpush.bf16.msra.mxu0 0
        %1350 = vmatpush.bf16.msra.mxu0 0
        %1351 = vmatpush.bf16.msra.mxu0 %v1330
        %1352 = vmatpush.bf16.msra.mxu0 %v1326
        %1353 = vmatmul.bf16.gmra.mxu0 %v1343
        %v1354 = vpop.f32.mrf.mxu0
        %v1355 = vadd.f32 0.0, %v1354
        %v1356 = vpop.f32.mrf.mxu0
        %1357 = vdwg.mxu0
        %1358 = vmatpush.bf16.msra.mxu0 0
        %1359 = vmatpush.bf16.msra.mxu0 0
        %1360 = vmatpush.bf16.msra.mxu0 0
        %1361 = vmatpush.bf16.msra.mxu0 0
        %1362 = vmatpush.bf16.msra.mxu0 0
        %1363 = vmatpush.bf16.msra.mxu0 0
        %1364 = vmatpush.bf16.msra.mxu0 %v1331
        %1365 = vmatpush.bf16.msra.mxu0 %v1327
        %1366 = vmatmul.bf16.gmra.mxu0 %v1343
        %v1367 = vpop.f32.mrf.mxu0
        %v1368 = vadd.f32 0.0, %v1367
        %v1369 = vpop.f32.mrf.mxu0
        %1370 = vdwg.mxu0
        %1371 = vmatpush.bf16.msra.mxu0 0
        %1372 = vmatpush.bf16.msra.mxu0 0
        %1373 = vmatpush.bf16.msra.mxu0 0
        %1374 = vmatpush.bf16.msra.mxu0 0
        %1375 = vmatpush.bf16.msra.mxu0 0
        %1376 = vmatpush.bf16.msra.mxu0 0
        %1377 = vmatpush.bf16.msra.mxu0 %v1332
        %1378 = vmatpush.bf16.msra.mxu0 %v1328
        %1379 = vmatmul.bf16.gmra.mxu0 %v1343
        %v1380 = vpop.f32.mrf.mxu0
        %v1381 = vadd.f32 0.0, %v1380
        %v1382 = vpop.f32.mrf.mxu0
        %1383 = vdwg.mxu0
        %1384 = vmatpush.bf16.msra.mxu0 0
        %1385 = vmatpush.bf16.msra.mxu0 0
        %1386 = vmatpush.bf16.msra.mxu0 0
        %1387 = vmatpush.bf16.msra.mxu0 0
        %1388 = vmatpush.bf16.msra.mxu0 0
        %1389 = vmatpush.bf16.msra.mxu0 0
        %1390 = vmatpush.bf16.msra.mxu0 %v1333
        %1391 = vmatpush.bf16.msra.mxu0 %v1329
        %1392 = vmatmul.bf16.gmra.mxu0 %v1343
        %v1393 = vpop.f32.mrf.mxu0
        %v1394 = vadd.f32 0.0, %v1393
        %v1395 = vpop.f32.mrf.mxu0
        %1396 = vdwg.mxu0
        %v1397 = vxor.u32 %v1355, 2147483648
        %v1398 = vxor.u32 %v1368, 2147483648
        %v1399 = vmul.f32 %v1397, 1.442695
        %v1400 = vpow.pop %v1399
        %v1401 = vmul.f32 %v1398, 1.442695
        %v1402 = vpow.pop %v1401
        %v1403 = vadd.f32 %v1400, 1.0
        %v1404 = vadd.f32 %v1402, 1.0
        %v1405 = vrcp.pop %v1403
        %v1406 = vmul.f32 %v1403, %v1405
        %v1407 = vsub.f32 1.0, %v1406
        %v1408 = vmul.f32 %v1405, %v1407
        %v1409 = vadd.f32 %v1405, %v1408
        %vm1410 = vweird.f32 %v1403
        %vm1411 = vweird.f32 %v1405
        %vm1412 = vmor %vm1410, %vm1411
        %v1413 = vsel %vm1412, %v1405, %v1409
        %v1414 = vand.u32 2147483647, %v1403
        %vm1415 = vcmp.eq.f32.partialorder %v1414, 8.507059e+37
        %v1416 = vand.u32 %v1403, 2147483648
        %v1417 = vor.u32 1.1754944e-38, %v1416
        %v1418 = vsel %vm1415, %v1417, %v1413
        %v1419 = vmul.f32 1.0, %v1418
        %v1420 = vrcp.pop %v1404
        %v1421 = vmul.f32 %v1404, %v1420
        %v1422 = vsub.f32 1.0, %v1421
        %v1423 = vmul.f32 %v1420, %v1422
        %v1424 = vadd.f32 %v1420, %v1423
        %vm1425 = vweird.f32 %v1404
        %vm1426 = vweird.f32 %v1420
        %vm1427 = vmor %vm1425, %vm1426
        %v1428 = vsel %vm1427, %v1420, %v1424
        %v1429 = vand.u32 2147483647, %v1404
        %vm1430 = vcmp.eq.f32.partialorder %v1429, 8.507059e+37
        %v1431 = vand.u32 %v1404, 2147483648
        %v1432 = vor.u32 1.1754944e-38, %v1431
        %v1433 = vsel %vm1430, %v1432, %v1428
        %v1434 = vmul.f32 1.0, %v1433
        %v1435 = vmul.f32 %v1355, %v1419
        %v1436 = vmul.f32 %v1368, %v1434
        %v1437 = vmul.f32 %v1435, %v1381
        %v1438 = vmul.f32 %v1436, %v1394
        %v1439 = vpack.c.bf16 %v1437, %v1437
        %v1440 = vpack.c.bf16 %v1438, %v1438
        %v1441 = vld [vmem:[%s14] sm:$0xf]
        %v1442 = vld [vmem:[%s14 + $0x4] sm:$0xf]
        %v1443 = vld [vmem:[%s14 + $0x8] sm:$0xf]
        %v1444 = vld [vmem:[%s14 + $0xc] sm:$0xf]
        %v1445 = vld [vmem:[%s14 + $0x10] sm:$0xf]
        %v1446 = vld [vmem:[%s14 + $0x14] sm:$0xf]
        %v1447 = vld [vmem:[%s14 + $0x18] sm:$0xf]
        %v1448 = vld [vmem:[%s14 + $0x1c] sm:$0xf]
        %v1449 = vld [vmem:[%s14 + $0x20] sm:$0xf]
        %v1450 = vld [vmem:[%s14 + $0x24] sm:$0xf]
        %v1451 = vld [vmem:[%s14 + $0x28] sm:$0xf]
        %v1452 = vld [vmem:[%s14 + $0x2c] sm:$0xf]
        %v1453 = vld [vmem:[%s14 + $0x30] sm:$0xf]
        %v1454 = vld [vmem:[%s14 + $0x34] sm:$0xf]
        %v1455 = vld [vmem:[%s14 + $0x38] sm:$0xf]
        %v1456 = vld [vmem:[%s14 + $0x3c] sm:$0xf]
        %v1457 = vld [vmem:[%s14 + $0x40] sm:$0xf]
        %v1458 = vld [vmem:[%s14 + $0x44] sm:$0xf]
        %v1459 = vld [vmem:[%s14 + $0x48] sm:$0xf]
        %v1460 = vld [vmem:[%s14 + $0x4c] sm:$0xf]
        %v1461 = vld [vmem:[%s14 + $0x50] sm:$0xf]
        %v1462 = vld [vmem:[%s14 + $0x54] sm:$0xf]
        %v1463 = vld [vmem:[%s14 + $0x58] sm:$0xf]
        %v1464 = vld [vmem:[%s14 + $0x5c] sm:$0xf]
        %v1465 = vld [vmem:[%s14 + $0x60] sm:$0xf]
        %v1466 = vld [vmem:[%s14 + $0x64] sm:$0xf]
        %v1467 = vld [vmem:[%s14 + $0x68] sm:$0xf]
        %v1468 = vld [vmem:[%s14 + $0x6c] sm:$0xf]
        %v1469 = vld [vmem:[%s14 + $0x70] sm:$0xf]
        %v1470 = vld [vmem:[%s14 + $0x74] sm:$0xf]
        %v1471 = vld [vmem:[%s14 + $0x78] sm:$0xf]
        %v1472 = vld [vmem:[%s14 + $0x7c] sm:$0xf]
        %v1505 = vunpack.c.l.b16 %v1441
        %v1506 = vunpack.c.l.b16 %v1442
        %v1507 = vunpack.c.l.b16 %v1443
        %v1508 = vunpack.c.l.b16 %v1444
        %v1509 = vunpack.c.l.b16 %v1445
        %v1510 = vunpack.c.l.b16 %v1446
        %v1511 = vunpack.c.l.b16 %v1447
        %v1512 = vunpack.c.l.b16 %v1448
        %v1513 = vunpack.c.l.b16 %v1449
        %v1514 = vunpack.c.l.b16 %v1450
        %v1515 = vunpack.c.l.b16 %v1451
        %v1516 = vunpack.c.l.b16 %v1452
        %v1517 = vunpack.c.l.b16 %v1453
        %v1518 = vunpack.c.l.b16 %v1454
        %v1519 = vunpack.c.l.b16 %v1455
        %v1520 = vunpack.c.l.b16 %v1456
        %v1521 = vunpack.c.l.b16 %v1457
        %v1522 = vunpack.c.l.b16 %v1458
        %v1523 = vunpack.c.l.b16 %v1459
        %v1524 = vunpack.c.l.b16 %v1460
        %v1525 = vunpack.c.l.b16 %v1461
        %v1526 = vunpack.c.l.b16 %v1462
        %v1527 = vunpack.c.l.b16 %v1463
        %v1528 = vunpack.c.l.b16 %v1464
        %v1529 = vunpack.c.l.b16 %v1465
        %v1530 = vunpack.c.l.b16 %v1466
        %v1531 = vunpack.c.l.b16 %v1467
        %v1532 = vunpack.c.l.b16 %v1468
        %v1533 = vunpack.c.l.b16 %v1469
        %v1534 = vunpack.c.l.b16 %v1470
        %v1535 = vunpack.c.l.b16 %v1471
        %v1536 = vunpack.c.l.b16 %v1472
        %v1537 = vpack.c.b16 %v1506, %v1505
        %v1538 = vpack.c.b16 %v1508, %v1507
        %v1539 = vpack.c.b16 %v1510, %v1509
        %v1540 = vpack.c.b16 %v1512, %v1511
        %v1541 = vpack.c.b16 %v1514, %v1513
        %v1542 = vpack.c.b16 %v1516, %v1515
        %v1543 = vpack.c.b16 %v1518, %v1517
        %v1544 = vpack.c.b16 %v1520, %v1519
        %v1545 = vpack.c.b16 %v1522, %v1521
        %v1546 = vpack.c.b16 %v1524, %v1523
        %v1547 = vpack.c.b16 %v1526, %v1525
        %v1548 = vpack.c.b16 %v1528, %v1527
        %v1549 = vpack.c.b16 %v1530, %v1529
        %v1550 = vpack.c.b16 %v1532, %v1531
        %v1551 = vpack.c.b16 %v1534, %v1533
        %v1552 = vpack.c.b16 %v1536, %v1535
        %1569 = vmatpush.bf16.msra.mxu0 %v1544
        %1570 = vmatpush.bf16.msra.mxu0 %v1543
        %1571 = vmatpush.bf16.msra.mxu0 %v1542
        %1572 = vmatpush.bf16.msra.mxu0 %v1541
        %1573 = vmatpush.bf16.msra.mxu0 %v1540
        %1574 = vmatpush.bf16.msra.mxu0 %v1539
        %1575 = vmatpush.bf16.msra.mxu0 %v1538
        %1576 = vmatpush.bf16.msra.mxu0 %v1537
        %1577 = vmatmul.bf16.gmra.mxu0 %v1439
        %v1578 = vpop.f32.mrf.mxu0
        %v1579 = vadd.f32 0.0, %v1578
        %v1580 = vpop.f32.mrf.mxu0
        %1581 = vdwg.mxu0
        %1582 = vmatpush.bf16.msra.mxu0 %v1552
        %1583 = vmatpush.bf16.msra.mxu0 %v1551
        %1584 = vmatpush.bf16.msra.mxu0 %v1550
        %1585 = vmatpush.bf16.msra.mxu0 %v1549
        %1586 = vmatpush.bf16.msra.mxu0 %v1548
        %1587 = vmatpush.bf16.msra.mxu0 %v1547
        %1588 = vmatpush.bf16.msra.mxu0 %v1546
        %1589 = vmatpush.bf16.msra.mxu0 %v1545
        %1590 = vmatmul.bf16.gmra.mxu0 %v1440
        %v1591 = vpop.f32.mrf.mxu0
        %v1592 = vadd.f32 %v1579, %v1591
        %v1593 = vpop.f32.mrf.mxu0
        %1594 = vdwg.mxu0
        %v1595 = vmul.f32 %v1592, 4.2426405
        %v1596 = vadd.f32 %v1260, %v1595
        %1597 = vst.msk [vmem:[%s509] sm:$0xff] %vm537, %v1596
        %s1598 = sand.u32 %s367, 1
        %s1599 = scalar_lea.sflag [#allocation3], %s1598
        %s1600 = sand.u32 %s367, 1
        %s1601 = smul.addr %s1600, 8
        %s1602 = scalar_lea.vmem [#allocation2], %s1601
        // Predicated region
        $region81: #{tpu_custom_call.1} parent=79 // pred_check
          %p1603 = pneg %p377
        $region82: #{tpu_custom_call.1} parent=79 // pred_check_branch
          %1605 = sbr.rel (%p1603) target = $region84
        $region83: #{tpu_custom_call.1} parent=79 // pred_region
          %1607 = vsyncadd %s1599, 0
          %s1608 = smul.addr %s29, 8
          %s1609 = scalar_lea.hbm %s15, %s1608
          %s1611 = sshll.u32 %s1602, 4
          %s1612 = int_to_ptr.vmem [resolvable:$true] %s1611
          %s1613 = sshll.u32 %s1609, 4
          %s1614 = int_to_ptr.hbm [resolvable:$true] %s1613
          %1616 = dma.vmem_to_hbm [thread:$0]  %s1612, 128, %s1614, %s1599
        $region84: #{tpu_custom_call.1} parent=79 // pred_fallthru
          _
      $region80: #{tpu_custom_call.1} parent=5 // pred_fallthru
        _
      %p1617 = scmp.le.s32.totalorder 2, %s24
      // Predicated region
      $region85: #{tpu_custom_call.1} parent=5 // pred_check
        %p1618 = pneg %p1617
      $region86: #{tpu_custom_call.1} parent=5 // pred_check_branch
        %1620 = sbr.rel (%p1618) target = $region88
      $region87: #{tpu_custom_call.1} parent=5 // pred_region
        %s1621 = ssub.s32 %s24, 2
        // Predicated region
        $region89: #{tpu_custom_call.1} parent=87 // pred_check
          %p1622 = pneg %p383
        $region90: #{tpu_custom_call.1} parent=87 // pred_check_branch
          %1624 = sbr.rel (%p1622) target = $region92
        $region91: #{tpu_custom_call.1} parent=87 // pred_region
          %s1625 = sand.u32 %s368, 1
          %s1626 = scalar_lea.sflag [#allocation3], %s1625
          %s1627 = sand.u32 %s368, 1
          %s1628 = smul.addr %s1627, 8
          %s1629 = scalar_lea.vmem [#allocation2], %s1628
          %1631 = dma.done %s1626, 128
        $region92: #{tpu_custom_call.1} parent=87 // pred_fallthru
          _
      $region88: #{tpu_custom_call.1} parent=5 // pred_fallthru
        _
    $region6: #{tpu_custom_call.1} parent=1 // loop_footer
      %s28 = sadd.s32 1, %s24
    $region7: #{tpu_custom_call.1} parent=1 // loop_footer_branch
      %23 = sbr.rel target = $region3
    $region8: #{tpu_custom_call.1} parent=1 // loop_exit
      _
    %1632 = vsyncpa [#allocation3], 1
    %s1633 = scalar_lea.sflag [#allocation3], 1
    %1634 = vsyncpa %s1633, 1

</llo_original>
